<compile_context>
chip_gen: v7x
topology: tpu7x:2x2x1
jax: 0.10.0
libtpu: 0.0.40
codegen_flags: <defaults>
</compile_context>

<pallas_src>
import functools

import jax
import jax.numpy as jnp
from jax import lax
from jax.experimental import pallas as pl
from jax.experimental.pallas import tpu as pltpu


# ----------------------------- Pallas kernel ------------------------------ #
def splat_kernel(x_ref, wc_ref, bc_ref, w1_ref, b1_ref, w2_ref, b2_ref, o_ref,
                 xbuf_ref, *, H, W, Ho, Wo, PH, PW, KH, KW, Cin, Cout_p,
                 radix, fold_kw):
    HW = Ho * Wo
    Ctot_p = Cout_p * radix

    x = x_ref[0]                                   # (H, W, Cin) compute dtype

    # Zero the halo scratch every step, then scatter the valid interior.
    # (A one-time memset keyed on program_id==0 would break if the 'parallel'
    # batch axis is megacore-split; the full memset is a tiny vst pass.)
    xbuf_ref[...] = jnp.zeros_like(xbuf_ref)

    acc = jnp.zeros((HW, Ctot_p), jnp.float32)
    if fold_kw:
        # xbuf: (Hp, Wo, KW*Cin) width-folded view, xbuf[h,w,kw*Cin+c] = xpad[h,w+kw,c].
        # Built with per-kw stores into the scratch (no lane-axis concatenate).
        for kw in range(KW):
            w_lo = max(PW - kw, 0)
            w_hi = min(PW - kw + W, Wo)
            s_lo = w_lo + kw - PW
            xbuf_ref[PH:PH + H, w_lo:w_hi, kw * Cin:(kw + 1) * Cin] = (
                x[:, s_lo:s_lo + (w_hi - w_lo), :])
        # KH dots with contraction K = KW*Cin.
        for kh in range(KH):
            xs = xbuf_ref[kh:kh + Ho, :, :].reshape(HW, KW * Cin)
            acc = acc + jnp.dot(xs, wc_ref[kh, :, :],
                                preferred_element_type=jnp.float32)
    else:
        # xbuf: (Hp, Wp, Cin) zero-padded activation.  KW sublane-shifted views
        # are built once; the per-kh slices are free dim-0 slices.
        xbuf_ref[PH:PH + H, PW:PW + W, :] = x
        xpad = xbuf_ref[...]
        xw = [xpad[:, kw:kw + Wo, :] for kw in range(KW)]
        for kh in range(KH):
            for kw in range(KW):
                xs = xw[kw][kh:kh + Ho].reshape(HW, Cin)
                acc = acc + jnp.dot(
                    xs, wc_ref[kh, kw * Cin:(kw + 1) * Cin, :],
                    preferred_element_type=jnp.float32)

    y = jnp.maximum(acc + bc_ref[...], 0.0)        # (HW, Ctot_p) f32

    # --- GAP: reduce over HW first, then over radix (cheap (1, .) vector ops) ---
    col = jnp.sum(y, axis=0, keepdims=True)        # (1, Ctot_p)
    gap = col[:, 0:Cout_p]
    for r in range(1, radix):
        gap = gap + col[:, r * Cout_p:(r + 1) * Cout_p]
    gap = gap * (1.0 / HW)                         # (1, Cout_p)

    # --- fc1 + ReLU, fc2 (bf16 MXU, f32 accumulation) ---
    z = jnp.maximum(
        jnp.dot(gap.astype(w1_ref.dtype), w1_ref[...],
                preferred_element_type=jnp.float32) + b1_ref[...], 0.0)
    a = jnp.dot(z.astype(w2_ref.dtype), w2_ref[...],
                preferred_element_type=jnp.float32) + b2_ref[...]   # (1, Ctot_p)

    # --- rSoftMax over radix: fc2 weights were re-ordered & padded wrapper-side
    #     so radix slice r is the lane-aligned block [r*Cout_p, (r+1)*Cout_p). ---
    if radix > 1:
        logits = [a[:, r * Cout_p:(r + 1) * Cout_p] for r in range(radix)]
        m = logits[0]
        for r in range(1, radix):
            m = jnp.maximum(m, logits[r])
        exps = [jnp.exp(l - m) for l in logits]
        denom = exps[0]
        for r in range(1, radix):
            denom = denom + exps[r]
        attens = [e / denom for e in exps]
    else:
        attens = [1.0 / (1.0 + jnp.exp(-a))]       # sigmoid

    out = attens[0] * y[:, 0:Cout_p]
    for r in range(1, radix):
        out = out + attens[r] * y[:, r * Cout_p:(r + 1) * Cout_p]
    o_ref[0] = out.reshape(Ho, Wo, Cout_p).astype(o_ref.dtype)


# ------------------------- weight densification ---------------------------- #
def densify_conv(w, groups, radix, cout_p):
    """(O, I/g, KH, KW) grouped conv weight -> dense (KH, KW*I, radix*cout_p).

    Contraction index is kw*I + cin (matches the in-kernel width-folded layout);
    each radix block of output channels is zero-padded from Cout to cout_p.
    """
    O, Ipg, KH, KW = w.shape
    I = Ipg * groups
    Opg = O // groups
    cout = O // radix
    Wd = jnp.zeros((KH, KW, I, O), w.dtype)
    for g in range(groups):
        blk = jnp.transpose(w[g * Opg:(g + 1) * Opg], (2, 3, 1, 0))  # (KH,KW,Ipg,Opg)
        Wd = Wd.at[:, :, g * Ipg:(g + 1) * Ipg, g * Opg:(g + 1) * Opg].set(blk)
    Wd = Wd.reshape(KH, KW, I, radix, cout)
    Wd = jnp.pad(Wd, ((0, 0), (0, 0), (0, 0), (0, 0), (0, cout_p - cout)))
    return Wd.reshape(KH, KW * I, radix * cout_p)


def densify_1x1(w, groups):
    """(O, I/g, 1, 1) grouped 1x1 conv weight -> dense (I, O) block-diag matrix."""
    O, Ipg, _, _ = w.shape
    I = Ipg * groups
    Opg = O // groups
    M = jnp.zeros((I, O), w.dtype)
    for g in range(groups):
        blk = w[g * Opg:(g + 1) * Opg, :, 0, 0]                      # (Opg, Ipg)
        M = M.at[g * Ipg:(g + 1) * Ipg, g * Opg:(g + 1) * Opg].set(blk.T)
    return M


def pad_radix_blocks(v, radix, cout, cout_p):
    """Flat (radix*cout,) bias -> (1, radix*cout_p) with zero lane padding per block."""
    return jnp.pad(v.reshape(radix, cout),
                   ((0, 0), (0, cout_p - cout))).reshape(1, radix * cout_p)


def reorder_fc2(w2_dense, b2, radix, cardinality, cout, cout_p):
    """Re-order fc2 columns from PyTorch (cardinality, radix, Cpc) layout to the
    padded per-radix-split layout (radix, cardinality, Cpc -> cout_p) used in-kernel."""
    inter = w2_dense.shape[0]
    cpc = cout // cardinality
    w = w2_dense.reshape(inter, cardinality, radix, cpc)
    w = jnp.transpose(w, (0, 2, 1, 3)).reshape(inter, radix, cout)
    w = jnp.pad(w, ((0, 0), (0, 0), (0, cout_p - cout))).reshape(inter, radix * cout_p)
    b = b2.reshape(cardinality, radix, cpc)
    b = jnp.transpose(b, (1, 0, 2)).reshape(radix, cout)
    b = jnp.pad(b, ((0, 0), (0, cout_p - cout))).reshape(1, radix * cout_p)
    return w, b


# ---------------------------- hardware probe -------------------------------- #
def _tpu_hw_params():
    """Host-side probe with conservative defaults; only tunes heuristics."""
    kind = ""
    try:
        kind = jax.devices()[0].device_kind.lower()
    except Exception:  # pragma: no cover - no device info available
        pass
    is_v7plus = ("v7" in kind) or ("tpu7" in kind)
    mxu_k = 256 if (is_v7plus or "v6" in kind) else 128
    try:
        vmem_phys = int(getattr(pltpu.get_tpu_info(), "vmem_capacity_bytes"))
    except Exception:  # pragma: no cover - older Pallas without get_tpu_info
        vmem_phys = (64 if is_v7plus else 128) * 2 ** 20
    return mxu_k, vmem_phys


# ------------------------------ glue / wrapper ----------------------------- #
def splat_conv2d_pallas(x_nchw, conv_w, conv_b, fc1_w, fc1_b, fc2_w, fc2_b, *,
                        radix, cardinality, stride=(1, 1), padding=(1, 1),
                        compute_dtype=jnp.bfloat16, out_dtype=jnp.bfloat16,
                        force_fold=None):
    if tuple(stride) != (1, 1):
        # TODO(synk): strided conv is not implemented; fail loudly instead of silently.
        raise NotImplementedError("SplAtConv2d Pallas kernel supports stride=(1,1) only")
    # TODO(synk): norm_layer/BatchNorm branch not implemented (module default: None).

    B, Cin, H, W = x_nchw.shape
    Ctot, KH, KW = conv_w.shape[0], conv_w.shape[2], conv_w.shape[3]
    groups = cardinality * radix
    assert Ctot % radix == 0, "conv out channels must be divisible by radix"
    Cout = Ctot // radix
    inter = fc1_w.shape[0]
    assert Cout % cardinality == 0 and Cin % groups == 0 and inter % cardinality == 0

    PH, PW = padding
    Hp, Wp = H + 2 * PH, W + 2 * PW
    Ho, Wo = Hp - KH + 1, Wp - KW + 1              # stride (1,1)

    mxu_k, vmem_phys = _tpu_hw_params()
    # Fold width taps into the contraction dim while the folded K suits the MXU
    # depth: v5e (128-deep) keeps the original Cin<128 rule, v6e/v7x (256-deep)
    # fold while KW*Cin <= 512.
    if force_fold is None:
        fold = (KW * Cin <= 2 * mxu_k) if mxu_k >= 256 else (Cin < mxu_k)
    else:
        fold = bool(force_fold)

    # Lane-dense epilogue: pad each radix block of output channels to 128k.
    Cout_p = pl.cdiv(Cout, 128) * 128
    Ctot_p = radix * Cout_p

    # NCHW -> NHWC; NO wrapper-side spatial padding (halo is built in VMEM in-kernel).
    x = jnp.transpose(x_nchw, (0, 2, 3, 1)).astype(compute_dtype)

    wc = densify_conv(conv_w, groups, radix, Cout_p).astype(compute_dtype)   # (KH, KW*Cin, Ctot_p)
    bc = pad_radix_blocks(conv_b.astype(jnp.float32), radix, Cout, Cout_p)   # (1, Ctot_p)
    w1 = densify_1x1(fc1_w, cardinality)                                     # (Cout, inter)
    w1 = jnp.pad(w1, ((0, Cout_p - Cout), (0, 0))).astype(compute_dtype)     # (Cout_p, inter)
    b1 = fc1_b.reshape(1, inter).astype(jnp.float32)
    w2d = densify_1x1(fc2_w, cardinality)                                    # (inter, Ctot)
    w2, b2 = reorder_fc2(w2d, fc2_b.astype(jnp.float32),
                         radix, cardinality, Cout, Cout_p)
    w2 = w2.astype(compute_dtype)                                            # (inter, Ctot_p)

    kernel = functools.partial(
        splat_kernel, H=H, W=W, Ho=Ho, Wo=Wo, PH=PH, PW=PW, KH=KH, KW=KW,
        Cin=Cin, Cout_p=Cout_p, radix=radix, fold_kw=fold)

    scratch_shape = (Hp, Wo, KW * Cin) if fold else (Hp, Wp, Cin)

    # VMEM budget: double-buffered I/O blocks, (single-buffered) weights, the
    # halo/fold scratch + shifted views, and the dominant f32 intermediates,
    # with 1.5x headroom.  Cap per generation: never request all of physical
    # VMEM (leave >=16 MiB / >=25% for Mosaic scratch + pipeline buffers)
    # -> ~48 MiB on v7x (64 MiB physical), ~96 MiB on v5e/v6e (128 MiB).
    isz = jnp.dtype(compute_dtype).itemsize
    osz = jnp.dtype(out_dtype).itemsize
    have_buffered = hasattr(pl, "Buffered")
    wbuf = 1 if have_buffered else 2
    scratch_bytes = scratch_shape[0] * scratch_shape[1] * scratch_shape[2] * isz
    views_bytes = 0 if fold else KW * Hp * Wo * Cin * isz
    est = (2 * H * W * Cin * isz                        # input block x2
           + 2 * Ho * Wo * Cout_p * osz                 # output block x2
           + wbuf * ((wc.size + w1.size + w2.size) * isz
                     + (bc.size + b1.size + b2.size) * 4)
           + scratch_bytes + views_bytes
           + Ho * Wo * KW * Cin * isz                   # im2col row-block copy per kh
           + 3 * Ho * Wo * Ctot_p * 4)                  # acc / y / weighted-sum (f32)
    vmem_cap = vmem_phys - max(16 * 2 ** 20, vmem_phys // 4)
    vmem_limit = int(min(max(int(1.5 * est), 32 * 2 ** 20), vmem_cap))

    buffered_kw = {"pipeline_mode": pl.Buffered(1)} if have_buffered else {}

    def const_spec(arr):
        # Grid-invariant operand: never re-DMAs, so one VMEM buffer suffices.
        rank = arr.ndim
        return pl.BlockSpec(arr.shape, lambda b, _r=rank: (0,) * _r, **buffered_kw)

    out_nhwc = pl.pallas_call(
        kernel,
        out_shape=jax.ShapeDtypeStruct((B, Ho, Wo, Cout_p), out_dtype),
        grid_spec=pltpu.PrefetchScalarGridSpec(
            num_scalar_prefetch=0,
            grid=(B,),
            in_specs=[
                pl.BlockSpec((1, H, W, Cin), lambda b: (b, 0, 0, 0)),
                const_spec(wc), const_spec(bc),
                const_spec(w1), const_spec(b1),
                const_spec(w2), const_spec(b2),
            ],
            out_specs=pl.BlockSpec((1, Ho, Wo, Cout_p), lambda b: (b, 0, 0, 0)),
            scratch_shapes=[pltpu.VMEM(scratch_shape, compute_dtype)],
        ),
        compiler_params=pltpu.CompilerParams(
            dimension_semantics=("parallel",),
            vmem_limit_bytes=vmem_limit),
    )(x, wc, bc, w1, b1, w2, b2)

    out = out_nhwc[..., :Cout]                                   # drop lane padding
    return jnp.transpose(out, (0, 3, 1, 2)).astype(x_nchw.dtype)  # NHWC -> NCHW


# --------------------------- pure-JAX reference ---------------------------- #
def ref_forward(x, conv_w, conv_b, fc1_w, fc1_b, fc2_w, fc2_b,
                *, radix, cardinality, padding=(1, 1)):
    groups = cardinality * radix
    y = lax.conv_general_dilated(
        x, conv_w, window_strides=(1, 1),
        padding=[(padding[0], padding[0]), (padding[1], padding[1])],
        dimension_numbers=('NCHW', 'OIHW', 'NCHW'),
        feature_group_count=groups) + conv_b[None, :, None, None]
    y = jnp.maximum(y, 0.0)
    B = y.shape[0]
    if radix > 1:
        splits = jnp.split(y, radix, axis=1)
        gap = sum(splits)
    else:
        gap = y
    gap = jnp.mean(gap, axis=(2, 3), keepdims=True)
    gap = lax.conv_general_dilated(
        gap, fc1_w, (1, 1), 'VALID',
        dimension_numbers=('NCHW', 'OIHW', 'NCHW'),
        feature_group_count=cardinality) + fc1_b[None, :, None, None]
    gap = jnp.maximum(gap, 0.0)
    atten = lax.conv_general_dilated(
        gap, fc2_w, (1, 1), 'VALID',
        dimension_numbers=('NCHW', 'OIHW', 'NCHW'),
        feature_group_count=cardinality) + fc2_b[None, :, None, None]
    a = atten.reshape(B, -1)
    if radix > 1:
        a = a.reshape(B, cardinality, radix, -1).transpose(0, 2, 1, 3)
        a = jax.nn.softmax(a, axis=1)
        a = a.reshape(B, -1)
    else:
        a = jax.nn.sigmoid(a)
    a = a.reshape(B, -1, 1, 1)
    if radix > 1:
        attens = jnp.split(a, radix, axis=1)
        out = sum(att * sp for att, sp in zip(attens, splits))
    else:
        out = a * y
    return out


# ---------------------------------- main ----------------------------------- #
def _make_params(key, Cin, Cout, radix, cardinality, reduction_factor=4, K=3):
    inter = max(Cin * radix // reduction_factor, 32)          # module formula
    Ctot = Cout * radix
    groups = cardinality * radix
    ks = jax.random.split(key, 6)
    conv_w = 0.1 * jax.random.normal(ks[0], (Ctot, Cin // groups, K, K), jnp.float32)
    conv_b = 0.1 * jax.random.normal(ks[1], (Ctot,), jnp.float32)
    fc1_w = 0.1 * jax.random.normal(ks[2], (inter, Cout // cardinality, 1, 1), jnp.float32)
    fc1_b = 0.1 * jax.random.normal(ks[3], (inter,), jnp.float32)
    fc2_w = 0.1 * jax.random.normal(ks[4], (Ctot, inter // cardinality, 1, 1), jnp.float32)
    fc2_b = 0.1 * jax.random.normal(ks[5], (Ctot,), jnp.float32)
    return conv_w, conv_b, fc1_w, fc1_b, fc2_w, fc2_b


def _check(name, out, ref, tol=3e-2):
    assert out.shape == ref.shape, (name, out.shape, ref.shape)
    err = float(jnp.max(jnp.abs(out.astype(jnp.float32) - ref)))
    # Scaled tolerance: bf16 activations/weights/output vs an all-f32 reference.
    bound = tol * (1.0 + float(jnp.max(jnp.abs(ref))))
    assert err <= bound, (name, err, bound)


if __name__ == "__main__":
    key = jax.random.PRNGKey(0)
    cases = [
        # (name,                B, Cin, H,  W,  Cout, radix, cardinality, force_fold)
        ("radix2_card1_fold",   2, 4,   16, 16, 8,    2,     1,            None),
        ("radix2_card1_unfold", 2, 4,   16, 16, 8,    2,     1,            False),
        ("radix1_sigmoid",      2, 4,   16, 16, 8,    1,     1,            None),
        ("radix2_card2",        1, 8,   8,  8,  8,    2,     2,            None),
    ]
    for i, (name, B, Cin, H, W, Cout, radix, card, force_fold) in enumerate(cases):
        kk = jax.random.fold_in(key, i)
        kx, kp = jax.random.split(kk)
        x = jax.random.normal(kx, (B, Cin, H, W), jnp.float32)
        params = _make_params(kp, Cin, Cout, radix, card)
        out = splat_conv2d_pallas(x, *params, radix=radix, cardinality=card,
                                  padding=(1, 1), force_fold=force_fold)
        out = jax.block_until_ready(out)
        ref = ref_forward(x, *params, radix=radix, cardinality=card, padding=(1, 1))
        _check(name, out, ref)
    print("KERNEL_OK")
</pallas_src>

<mosaic_0001>
module attributes {stable_mosaic.version = 11 : i64} {
  func.func @splat_kernel(%arg0: i32, %arg1: memref<1x16x16x4xbf16, #tpu.memory_space<vmem>>, %arg2: memref<3x12x256xbf16, #tpu.memory_space<vmem>>, %arg3: memref<1x256xf32, #tpu.memory_space<vmem>>, %arg4: memref<128x32xbf16, #tpu.memory_space<vmem>>, %arg5: memref<1x32xf32, #tpu.memory_space<vmem>>, %arg6: memref<32x256xbf16, #tpu.memory_space<vmem>>, %arg7: memref<1x256xf32, #tpu.memory_space<vmem>>, %arg8: memref<1x16x16x128xbf16, #tpu.memory_space<vmem>>, %arg9: memref<18x16x12xbf16, #tpu.memory_space<vmem>>) attributes {dimension_semantics = [#tpu.dimension_semantics<parallel>], iteration_bounds = array<i64: 2>, scalar_prefetch = 0 : i64, scratch_operands = 1 : i64, tpu.core_type = #tpu.core_type<tc>, window_params = [{transform_indices = @transform_0, window_bounds = array<i64: 1, 16, 16, 4>}, {pipeline_mode = #tpu.pipeline_mode<synchronous>, transform_indices = @transform_1, window_bounds = array<i64: 3, 12, 256>}, {pipeline_mode = #tpu.pipeline_mode<synchronous>, transform_indices = @transform_2, window_bounds = array<i64: 1, 256>}, {pipeline_mode = #tpu.pipeline_mode<synchronous>, transform_indices = @transform_3, window_bounds = array<i64: 128, 32>}, {pipeline_mode = #tpu.pipeline_mode<synchronous>, transform_indices = @transform_4, window_bounds = array<i64: 1, 32>}, {pipeline_mode = #tpu.pipeline_mode<synchronous>, transform_indices = @transform_5, window_bounds = array<i64: 32, 256>}, {pipeline_mode = #tpu.pipeline_mode<synchronous>, transform_indices = @transform_6, window_bounds = array<i64: 1, 256>}, {transform_indices = @transform_7, window_bounds = array<i64: 1, 16, 16, 128>}]} {
    %c0 = arith.constant 0 : index
    %c0_0 = arith.constant 0 : index
    %c0_1 = arith.constant 0 : index
    %c0_2 = arith.constant 0 : index
    %0 = vector.load %arg1[%c0, %c0_0, %c0_1, %c0_2] : memref<1x16x16x4xbf16, #tpu.memory_space<vmem>>, vector<1x16x16x4xbf16>
    %1 = vector.shape_cast %0 : vector<1x16x16x4xbf16> to vector<16x16x4xbf16>
    %cst = arith.constant 0.000000e+00 : bf16
    %2 = vector.broadcast %cst : bf16 to vector<18x16x12xbf16>
    %c0_3 = arith.constant 0 : index
    %c0_4 = arith.constant 0 : index
    %c0_5 = arith.constant 0 : index
    %3 = vector.load %arg9[%c0_3, %c0_4, %c0_5] : memref<18x16x12xbf16, #tpu.memory_space<vmem>>, vector<18x16x12xbf16>
    tpu.vector_store %arg9[%c0_3, %c0_4, %c0_5], %2 {strides = array<i32>} : memref<18x16x12xbf16, #tpu.memory_space<vmem>>, vector<18x16x12xbf16>,
    %cst_6 = arith.constant 0.000000e+00 : f32
    %4 = vector.broadcast %cst_6 : f32 to vector<256x256xf32>
    %5 = vector.extract_strided_slice %1 {offsets = [0, 0, 0], sizes = [16, 15, 4], strides = [1, 1, 1]} : vector<16x16x4xbf16> to vector<16x15x4xbf16>
    %c1 = arith.constant 1 : index
    %c1_7 = arith.constant 1 : index
    %c0_8 = arith.constant 0 : index
    %6 = vector.load %arg9[%c1, %c1_7, %c0_8] : memref<18x16x12xbf16, #tpu.memory_space<vmem>>, vector<16x15x4xbf16>
    tpu.vector_store %arg9[%c1, %c1_7, %c0_8], %5 {strides = array<i32>} : memref<18x16x12xbf16, #tpu.memory_space<vmem>>, vector<16x15x4xbf16>,
    %c1_9 = arith.constant 1 : index
    %c0_10 = arith.constant 0 : index
    %c4 = arith.constant 4 : index
    %7 = vector.load %arg9[%c1_9, %c0_10, %c4] : memref<18x16x12xbf16, #tpu.memory_space<vmem>>, vector<16x16x4xbf16>
    tpu.vector_store %arg9[%c1_9, %c0_10, %c4], %1 {strides = array<i32>} : memref<18x16x12xbf16, #tpu.memory_space<vmem>>, vector<16x16x4xbf16>,
    %8 = vector.extract_strided_slice %1 {offsets = [0, 1, 0], sizes = [16, 15, 4], strides = [1, 1, 1]} : vector<16x16x4xbf16> to vector<16x15x4xbf16>
    %c1_11 = arith.constant 1 : index
    %c0_12 = arith.constant 0 : index
    %c8 = arith.constant 8 : index
    %9 = vector.load %arg9[%c1_11, %c0_12, %c8] : memref<18x16x12xbf16, #tpu.memory_space<vmem>>, vector<16x15x4xbf16>
    tpu.vector_store %arg9[%c1_11, %c0_12, %c8], %8 {strides = array<i32>} : memref<18x16x12xbf16, #tpu.memory_space<vmem>>, vector<16x15x4xbf16>,
    %c0_13 = arith.constant 0 : index
    %c0_14 = arith.constant 0 : index
    %c0_15 = arith.constant 0 : index
    %10 = vector.load %arg9[%c0_13, %c0_14, %c0_15] : memref<18x16x12xbf16, #tpu.memory_space<vmem>>, vector<16x16x12xbf16>
    %11 = vector.shape_cast %10 : vector<16x16x12xbf16> to vector<256x12xbf16>
    %c0_16 = arith.constant 0 : index
    %c0_17 = arith.constant 0 : index
    %c0_18 = arith.constant 0 : index
    %12 = vector.load %arg2[%c0_16, %c0_17, %c0_18] : memref<3x12x256xbf16, #tpu.memory_space<vmem>>, vector<1x12x256xbf16>
    %13 = vector.shape_cast %12 : vector<1x12x256xbf16> to vector<12x256xbf16>
    %cst_19 = arith.constant dense<0.000000e+00> : vector<256x256xf32>
    %14 = tpu.matmul %11, %13, %cst_19 {dimension_numbers = #tpu.dot_dimension_numbers<[1], [0], [0], [1], [0, 0, 1, 1], [], []>} : vector<256x12xbf16>, vector<12x256xbf16>, vector<256x256xf32> -> vector<256x256xf32>
    %15 = arith.addf %4, %14 : vector<256x256xf32>
    %c1_20 = arith.constant 1 : index
    %c0_21 = arith.constant 0 : index
    %c0_22 = arith.constant 0 : index
    %16 = vector.load %arg9[%c1_20, %c0_21, %c0_22] : memref<18x16x12xbf16, #tpu.memory_space<vmem>>, vector<16x16x12xbf16>
    %17 = vector.shape_cast %16 : vector<16x16x12xbf16> to vector<256x12xbf16>
    %c1_23 = arith.constant 1 : index
    %c0_24 = arith.constant 0 : index
    %c0_25 = arith.constant 0 : index
    %18 = vector.load %arg2[%c1_23, %c0_24, %c0_25] : memref<3x12x256xbf16, #tpu.memory_space<vmem>>, vector<1x12x256xbf16>
    %19 = vector.shape_cast %18 : vector<1x12x256xbf16> to vector<12x256xbf16>
    %cst_26 = arith.constant dense<0.000000e+00> : vector<256x256xf32>
    %20 = tpu.matmul %17, %19, %cst_26 {dimension_numbers = #tpu.dot_dimension_numbers<[1], [0], [0], [1], [0, 0, 1, 1], [], []>} : vector<256x12xbf16>, vector<12x256xbf16>, vector<256x256xf32> -> vector<256x256xf32>
    %21 = arith.addf %15, %20 : vector<256x256xf32>
    %c2 = arith.constant 2 : index
    %c0_27 = arith.constant 0 : index
    %c0_28 = arith.constant 0 : index
    %22 = vector.load %arg9[%c2, %c0_27, %c0_28] : memref<18x16x12xbf16, #tpu.memory_space<vmem>>, vector<16x16x12xbf16>
    %23 = vector.shape_cast %22 : vector<16x16x12xbf16> to vector<256x12xbf16>
    %c2_29 = arith.constant 2 : index
    %c0_30 = arith.constant 0 : index
    %c0_31 = arith.constant 0 : index
    %24 = vector.load %arg2[%c2_29, %c0_30, %c0_31] : memref<3x12x256xbf16, #tpu.memory_space<vmem>>, vector<1x12x256xbf16>
    %25 = vector.shape_cast %24 : vector<1x12x256xbf16> to vector<12x256xbf16>
    %cst_32 = arith.constant dense<0.000000e+00> : vector<256x256xf32>
    %26 = tpu.matmul %23, %25, %cst_32 {dimension_numbers = #tpu.dot_dimension_numbers<[1], [0], [0], [1], [0, 0, 1, 1], [], []>} : vector<256x12xbf16>, vector<12x256xbf16>, vector<256x256xf32> -> vector<256x256xf32>
    %27 = arith.addf %21, %26 : vector<256x256xf32>
    %c0_33 = arith.constant 0 : index
    %c0_34 = arith.constant 0 : index
    %28 = vector.load %arg3[%c0_33, %c0_34] : memref<1x256xf32, #tpu.memory_space<vmem>>, vector<1x256xf32>
    %29 = vector.broadcast %28 : vector<1x256xf32> to vector<256x256xf32>
    %30 = arith.addf %27, %29 : vector<256x256xf32>
    %cst_35 = arith.constant 0.000000e+00 : f32
    %31 = vector.broadcast %cst_35 : f32 to vector<256x256xf32>
    %32 = arith.maximumf %30, %31 : vector<256x256xf32>
    %cst_36 = arith.constant dense<0.000000e+00> : vector<256xf32>
    %33 = vector.multi_reduction <add>, %32, %cst_36 [0] : vector<256x256xf32> to vector<256xf32>
    %34 = vector.shape_cast %33 : vector<256xf32> to vector<1x256xf32>
    %35 = vector.extract_strided_slice %34 {offsets = [0, 0], sizes = [1, 128], strides = [1, 1]} : vector<1x256xf32> to vector<1x128xf32>
    %36 = vector.extract_strided_slice %34 {offsets = [0, 128], sizes = [1, 128], strides = [1, 1]} : vector<1x256xf32> to vector<1x128xf32>
    %37 = arith.addf %35, %36 : vector<1x128xf32>
    %cst_37 = arith.constant 3.906250e-03 : f32
    %38 = vector.broadcast %cst_37 : f32 to vector<1x128xf32>
    %39 = arith.mulf %37, %38 : vector<1x128xf32>
    %40 = arith.truncf %39 : vector<1x128xf32> to vector<1x128xbf16>
    %c0_38 = arith.constant 0 : index
    %c0_39 = arith.constant 0 : index
    %41 = vector.load %arg4[%c0_38, %c0_39] : memref<128x32xbf16, #tpu.memory_space<vmem>>, vector<128x32xbf16>
    %cst_40 = arith.constant dense<0.000000e+00> : vector<1x32xf32>
    %42 = tpu.matmul %40, %41, %cst_40 {dimension_numbers = #tpu.dot_dimension_numbers<[1], [0], [0], [1], [0, 0, 1, 1], [], []>} : vector<1x128xbf16>, vector<128x32xbf16>, vector<1x32xf32> -> vector<1x32xf32>
    %c0_41 = arith.constant 0 : index
    %c0_42 = arith.constant 0 : index
    %43 = vector.load %arg5[%c0_41, %c0_42] : memref<1x32xf32, #tpu.memory_space<vmem>>, vector<1x32xf32>
    %44 = arith.addf %42, %43 : vector<1x32xf32>
    %cst_43 = arith.constant 0.000000e+00 : f32
    %45 = vector.broadcast %cst_43 : f32 to vector<1x32xf32>
    %46 = arith.maximumf %44, %45 : vector<1x32xf32>
    %47 = arith.truncf %46 : vector<1x32xf32> to vector<1x32xbf16>
    %c0_44 = arith.constant 0 : index
    %c0_45 = arith.constant 0 : index
    %48 = vector.load %arg6[%c0_44, %c0_45] : memref<32x256xbf16, #tpu.memory_space<vmem>>, vector<32x256xbf16>
    %cst_46 = arith.constant dense<0.000000e+00> : vector<1x256xf32>
    %49 = tpu.matmul %47, %48, %cst_46 {dimension_numbers = #tpu.dot_dimension_numbers<[1], [0], [0], [1], [0, 0, 1, 1], [], []>} : vector<1x32xbf16>, vector<32x256xbf16>, vector<1x256xf32> -> vector<1x256xf32>
    %c0_47 = arith.constant 0 : index
    %c0_48 = arith.constant 0 : index
    %50 = vector.load %arg7[%c0_47, %c0_48] : memref<1x256xf32, #tpu.memory_space<vmem>>, vector<1x256xf32>
    %51 = arith.addf %49, %50 : vector<1x256xf32>
    %52 = vector.extract_strided_slice %51 {offsets = [0, 0], sizes = [1, 128], strides = [1, 1]} : vector<1x256xf32> to vector<1x128xf32>
    %53 = vector.extract_strided_slice %51 {offsets = [0, 128], sizes = [1, 128], strides = [1, 1]} : vector<1x256xf32> to vector<1x128xf32>
    %54 = arith.maximumf %52, %53 : vector<1x128xf32>
    %55 = arith.subf %52, %54 : vector<1x128xf32>
    %56 = math.exp %55 : vector<1x128xf32>
    %57 = arith.subf %53, %54 : vector<1x128xf32>
    %58 = math.exp %57 : vector<1x128xf32>
    %59 = arith.addf %56, %58 : vector<1x128xf32>
    %60 = arith.divf %56, %59 : vector<1x128xf32>
    %61 = arith.divf %58, %59 : vector<1x128xf32>
    %62 = vector.extract_strided_slice %32 {offsets = [0, 0], sizes = [256, 128], strides = [1, 1]} : vector<256x256xf32> to vector<256x128xf32>
    %63 = vector.broadcast %60 : vector<1x128xf32> to vector<256x128xf32>
    %64 = arith.mulf %63, %62 : vector<256x128xf32>
    %65 = vector.extract_strided_slice %32 {offsets = [0, 128], sizes = [256, 128], strides = [1, 1]} : vector<256x256xf32> to vector<256x128xf32>
    %66 = vector.broadcast %61 : vector<1x128xf32> to vector<256x128xf32>
    %67 = arith.mulf %66, %65 : vector<256x128xf32>
    %68 = arith.addf %64, %67 : vector<256x128xf32>
    %69 = vector.shape_cast %68 : vector<256x128xf32> to vector<16x16x128xf32>
    %70 = arith.truncf %69 : vector<16x16x128xf32> to vector<16x16x128xbf16>
    %c0_49 = arith.constant 0 : index
    %c0_50 = arith.constant 0 : index
    %c0_51 = arith.constant 0 : index
    %c0_52 = arith.constant 0 : index
    %71 = vector.load %arg8[%c0_49, %c0_50, %c0_51, %c0_52] : memref<1x16x16x128xbf16, #tpu.memory_space<vmem>>, vector<1x16x16x128xbf16>
    %72 = vector.shape_cast %71 : vector<1x16x16x128xbf16> to vector<16x16x128xbf16>
    %73 = vector.shape_cast %70 : vector<16x16x128xbf16> to vector<1x16x16x128xbf16>
    tpu.vector_store %arg8[%c0_49, %c0_50, %c0_51, %c0_52], %73 {strides = array<i32>} : memref<1x16x16x128xbf16, #tpu.memory_space<vmem>>, vector<1x16x16x128xbf16>,
    return
  }
  func.func @transform_0(%arg0: i32) -> (i32, i32, i32, i32) {
    %c0_i32 = arith.constant 0 : i32
    %c0_i32_0 = arith.constant 0 : i32
    %c0_i32_1 = arith.constant 0 : i32
    %c0_i32_2 = arith.constant 0 : i32
    return %arg0, %c0_i32, %c0_i32_0, %c0_i32_1 : i32, i32, i32, i32
  }
  func.func @transform_1(%arg0: i32) -> (i32, i32, i32) {
    %c0_i32 = arith.constant 0 : i32
    %c0_i32_0 = arith.constant 0 : i32
    %c0_i32_1 = arith.constant 0 : i32
    %c0_i32_2 = arith.constant 0 : i32
    return %c0_i32, %c0_i32_0, %c0_i32_1 : i32, i32, i32
  }
  func.func @transform_2(%arg0: i32) -> (i32, i32) {
    %c0_i32 = arith.constant 0 : i32
    %c0_i32_0 = arith.constant 0 : i32
    %c0_i32_1 = arith.constant 0 : i32
    return %c0_i32, %c0_i32_0 : i32, i32
  }
  func.func @transform_3(%arg0: i32) -> (i32, i32) {
    %c0_i32 = arith.constant 0 : i32
    %c0_i32_0 = arith.constant 0 : i32
    %c0_i32_1 = arith.constant 0 : i32
    return %c0_i32, %c0_i32_0 : i32, i32
  }
  func.func @transform_4(%arg0: i32) -> (i32, i32) {
    %c0_i32 = arith.constant 0 : i32
    %c0_i32_0 = arith.constant 0 : i32
    %c0_i32_1 = arith.constant 0 : i32
    return %c0_i32, %c0_i32_0 : i32, i32
  }
  func.func @transform_5(%arg0: i32) -> (i32, i32) {
    %c0_i32 = arith.constant 0 : i32
    %c0_i32_0 = arith.constant 0 : i32
    %c0_i32_1 = arith.constant 0 : i32
    return %c0_i32, %c0_i32_0 : i32, i32
  }
  func.func @transform_6(%arg0: i32) -> (i32, i32) {
    %c0_i32 = arith.constant 0 : i32
    %c0_i32_0 = arith.constant 0 : i32
    %c0_i32_1 = arith.constant 0 : i32
    return %c0_i32, %c0_i32_0 : i32, i32
  }
  func.func @transform_7(%arg0: i32) -> (i32, i32, i32, i32) {
    %c0_i32 = arith.constant 0 : i32
    %c0_i32_0 = arith.constant 0 : i32
    %c0_i32_1 = arith.constant 0 : i32
    %c0_i32_2 = arith.constant 0 : i32
    return %arg0, %c0_i32, %c0_i32_0, %c0_i32_1 : i32, i32, i32, i32
  }
}

</mosaic_0001>

<llo_original>
// kernel: tpu_custom_call.1
$region0: #{tpu_custom_call.1}
  #allocation0 [shape = 'u32[]', space=smem, size = 0x4, offset = 0x4, fixed_abs, tag = 'smem constant byte address 0x4 - core index']
  #allocation1 [shape = 'u32[144,128]{1,0:T(1,128)}', space=vmem, size = 0x12000, scoped, tag = 'internal scratch']
  #allocation2 [shape = 'bf16[18,16,12]{2,1,0:T(16,128)(2,1)}', space=vmem, size = 0x12000, scoped, tag = 'scratch operand']
  %s0 = inlined_call_operand.vmem [shape: bf16[2,16,16,4], index: 0, kind: input, shape index: {}]
  %s1 = inlined_call_operand.vmem [shape: bf16[3,12,256], index: 1, kind: input, shape index: {}]
  %s2 = inlined_call_operand.vmem [shape: f32[1,256], index: 2, kind: input, shape index: {}]
  %s3 = inlined_call_operand.vmem [shape: bf16[128,32], index: 3, kind: input, shape index: {}]
  %s4 = inlined_call_operand.vmem [shape: f32[1,32], index: 4, kind: input, shape index: {}]
  %s5 = inlined_call_operand.vmem [shape: bf16[32,256], index: 5, kind: input, shape index: {}]
  %s6 = inlined_call_operand.vmem [shape: f32[1,256], index: 6, kind: input, shape index: {}]
  %s7 = inlined_call_operand.hbm [shape: bf16[2,16,16,128], index: 7, kind: output, shape index: {}]
  %s8 = sld [smem:[#allocation0]]
  $region61: #{tpu_custom_call.1} parent=0
    _
  %s10 = ssub.s32 1, %s8
  %s11 = scalar_select 0, %s10, %s8
  $region1: #{tpu_custom_call.1} parent=0
    #allocation3 [shape = 'u8[131072]{0}', space=vmem, size = 0x20000, scoped, tag = 'output window, operand 0']
    #allocation4 [shape = 's32[2]{0}', space=sflag, size = 0x8, scoped, tag = 'scoped memory for tpu_custom_call.1']
    %12 = vsyncpa [#allocation4], 0
    %s13 = scalar_lea.sflag [#allocation4], 1
    %14 = vsyncpa %s13, 0
    loop: start=0, step=1, limit=4
    $region2: #{tpu_custom_call.1} parent=1 // loop_pre_header
      _
    $region3: #{tpu_custom_call.1} parent=1 // loop_header
      %s16 = sphi 0, %s20
      %p17 = scmp.ge.s32.totalorder %s16, 4
      %s26 = sphi 0, %s28
      %s29 = sphi 0, %s26
      %s30 = sphi 0, %s29
      %s46 = sphi 0, %s30
      %s50 = sphi 0, %s50
      %s52 = sphi 0, %s50
      %s53 = sphi 0, %s52
      %s67 = sphi 0, %s53
      %s71 = sphi 0, %s71
      %s73 = sphi 0, %s71
      %s74 = sphi 0, %s73
      %s88 = sphi 0, %s74
      %s92 = sphi 0, %s92
      %s94 = sphi 0, %s92
      %s95 = sphi 0, %s94
      %s109 = sphi 0, %s95
      %s113 = sphi 0, %s113
      %s115 = sphi 0, %s113
      %s116 = sphi 0, %s115
      %s130 = sphi 0, %s116
      %s134 = sphi 0, %s134
      %s136 = sphi 0, %s134
      %s137 = sphi 0, %s136
      %s151 = sphi 0, %s137
      %s155 = sphi 0, %s155
      %s157 = sphi 0, %s155
      %s158 = sphi 0, %s157
      %s172 = sphi 0, %s158
      %s178 = sphi 0, %s180
      %s181 = sphi 0, %s178
      %s182 = sphi 0, %s181
      %s198 = sphi 0, %s182
    $region4: #{tpu_custom_call.1} parent=1 // loop_header_branch
      %19 = sbr.rel (%p17) target = $region8
    $region5: #{tpu_custom_call.1} parent=1 // loop_body
      %s21 = ssub.s32 %s16, 1
      %s22 = ssub.s32 %s16, 2
      %s23 = sadd.s32 %s16, 1
      %s24 = ssub.s32 %s16, %s23
      %p25 = scmp.eq.s32.totalorder %s24, 0
      %s27 = sadd.s32 %s26, 1
      %s28 = scalar_select %p25, %s26, %s27
      %p31 = pneg %p25
      %p32 = scmp.eq.s32.totalorder %s16, 1
      %p33 = por %p31, %p32
      %p34 = scmp.ne.s32.totalorder %s26, %s29
      %p35 = scmp.eq.s32.totalorder %s16, 0
      %p36 = por %p34, %p35
      %p37 = scmp.ne.s32.totalorder %s26, %s29
      %p38 = scmp.eq.s32.totalorder %s21, 1
      %p39 = por %p37, %p38
      %p40 = scmp.ne.s32.totalorder %s29, %s30
      %p41 = scmp.eq.s32.totalorder %s21, 0
      %p42 = por %p40, %p41
      %p43 = scmp.ne.s32.totalorder %s29, %s30
      %p44 = scmp.eq.s32.totalorder %s22, 1
      %p45 = por %p43, %p44
      %p47 = scmp.ne.s32.totalorder %s30, %s46
      %p48 = scmp.eq.s32.totalorder %s22, 0
      %p49 = por %p47, %p48
      %s51 = sadd.s32 %s50, 1
      %p54 = scmp.eq.s32.totalorder %s16, 1
      %p55 = scmp.ne.s32.totalorder %s50, %s52
      %p56 = scmp.eq.s32.totalorder %s16, 0
      %p57 = por %p55, %p56
      %p58 = scmp.ne.s32.totalorder %s50, %s52
      %p59 = scmp.eq.s32.totalorder %s21, 1
      %p60 = por %p58, %p59
      %p61 = scmp.ne.s32.totalorder %s52, %s53
      %p62 = scmp.eq.s32.totalorder %s21, 0
      %p63 = por %p61, %p62
      %p64 = scmp.ne.s32.totalorder %s52, %s53
      %p65 = scmp.eq.s32.totalorder %s22, 1
      %p66 = por %p64, %p65
      %p68 = scmp.ne.s32.totalorder %s53, %s67
      %p69 = scmp.eq.s32.totalorder %s22, 0
      %p70 = por %p68, %p69
      %s72 = sadd.s32 %s71, 1
      %p75 = scmp.eq.s32.totalorder %s16, 1
      %p76 = scmp.ne.s32.totalorder %s71, %s73
      %p77 = scmp.eq.s32.totalorder %s16, 0
      %p78 = por %p76, %p77
      %p79 = scmp.ne.s32.totalorder %s71, %s73
      %p80 = scmp.eq.s32.totalorder %s21, 1
      %p81 = por %p79, %p80
      %p82 = scmp.ne.s32.totalorder %s73, %s74
      %p83 = scmp.eq.s32.totalorder %s21, 0
      %p84 = por %p82, %p83
      %p85 = scmp.ne.s32.totalorder %s73, %s74
      %p86 = scmp.eq.s32.totalorder %s22, 1
      %p87 = por %p85, %p86
      %p89 = scmp.ne.s32.totalorder %s74, %s88
      %p90 = scmp.eq.s32.totalorder %s22, 0
      %p91 = por %p89, %p90
      %s93 = sadd.s32 %s92, 1
      %p96 = scmp.eq.s32.totalorder %s16, 1
      %p97 = scmp.ne.s32.totalorder %s92, %s94
      %p98 = scmp.eq.s32.totalorder %s16, 0
      %p99 = por %p97, %p98
      %p100 = scmp.ne.s32.totalorder %s92, %s94
      %p101 = scmp.eq.s32.totalorder %s21, 1
      %p102 = por %p100, %p101
      %p103 = scmp.ne.s32.totalorder %s94, %s95
      %p104 = scmp.eq.s32.totalorder %s21, 0
      %p105 = por %p103, %p104
      %p106 = scmp.ne.s32.totalorder %s94, %s95
      %p107 = scmp.eq.s32.totalorder %s22, 1
      %p108 = por %p106, %p107
      %p110 = scmp.ne.s32.totalorder %s95, %s109
      %p111 = scmp.eq.s32.totalorder %s22, 0
      %p112 = por %p110, %p111
      %s114 = sadd.s32 %s113, 1
      %p117 = scmp.eq.s32.totalorder %s16, 1
      %p118 = scmp.ne.s32.totalorder %s113, %s115
      %p119 = scmp.eq.s32.totalorder %s16, 0
      %p120 = por %p118, %p119
      %p121 = scmp.ne.s32.totalorder %s113, %s115
      %p122 = scmp.eq.s32.totalorder %s21, 1
      %p123 = por %p121, %p122
      %p124 = scmp.ne.s32.totalorder %s115, %s116
      %p125 = scmp.eq.s32.totalorder %s21, 0
      %p126 = por %p124, %p125
      %p127 = scmp.ne.s32.totalorder %s115, %s116
      %p128 = scmp.eq.s32.totalorder %s22, 1
      %p129 = por %p127, %p128
      %p131 = scmp.ne.s32.totalorder %s116, %s130
      %p132 = scmp.eq.s32.totalorder %s22, 0
      %p133 = por %p131, %p132
      %s135 = sadd.s32 %s134, 1
      %p138 = scmp.eq.s32.totalorder %s16, 1
      %p139 = scmp.ne.s32.totalorder %s134, %s136
      %p140 = scmp.eq.s32.totalorder %s16, 0
      %p141 = por %p139, %p140
      %p142 = scmp.ne.s32.totalorder %s134, %s136
      %p143 = scmp.eq.s32.totalorder %s21, 1
      %p144 = por %p142, %p143
      %p145 = scmp.ne.s32.totalorder %s136, %s137
      %p146 = scmp.eq.s32.totalorder %s21, 0
      %p147 = por %p145, %p146
      %p148 = scmp.ne.s32.totalorder %s136, %s137
      %p149 = scmp.eq.s32.totalorder %s22, 1
      %p150 = por %p148, %p149
      %p152 = scmp.ne.s32.totalorder %s137, %s151
      %p153 = scmp.eq.s32.totalorder %s22, 0
      %p154 = por %p152, %p153
      %s156 = sadd.s32 %s155, 1
      %p159 = scmp.eq.s32.totalorder %s16, 1
      %p160 = scmp.ne.s32.totalorder %s155, %s157
      %p161 = scmp.eq.s32.totalorder %s16, 0
      %p162 = por %p160, %p161
      %p163 = scmp.ne.s32.totalorder %s155, %s157
      %p164 = scmp.eq.s32.totalorder %s21, 1
      %p165 = por %p163, %p164
      %p166 = scmp.ne.s32.totalorder %s157, %s158
      %p167 = scmp.eq.s32.totalorder %s21, 0
      %p168 = por %p166, %p167
      %p169 = scmp.ne.s32.totalorder %s157, %s158
      %p170 = scmp.eq.s32.totalorder %s22, 1
      %p171 = por %p169, %p170
      %p173 = scmp.ne.s32.totalorder %s158, %s172
      %p174 = scmp.eq.s32.totalorder %s22, 0
      %p175 = por %p173, %p174
      %s176 = ssub.s32 %s16, %s23
      %p177 = scmp.eq.s32.totalorder %s176, 0
      %s179 = sadd.s32 %s178, 1
      %s180 = scalar_select %p177, %s178, %s179
      %p183 = pneg %p177
      %p184 = scmp.eq.s32.totalorder %s16, 1
      %p185 = por %p183, %p184
      %p186 = scmp.ne.s32.totalorder %s178, %s181
      %p187 = scmp.eq.s32.totalorder %s16, 0
      %p188 = por %p186, %p187
      %p189 = scmp.ne.s32.totalorder %s178, %s181
      %p190 = scmp.eq.s32.totalorder %s21, 1
      %p191 = por %p189, %p190
      %p192 = scmp.ne.s32.totalorder %s181, %s182
      %p193 = scmp.eq.s32.totalorder %s21, 0
      %p194 = por %p192, %p193
      %p195 = scmp.ne.s32.totalorder %s181, %s182
      %p196 = scmp.eq.s32.totalorder %s22, 1
      %p197 = por %p195, %p196
      %p199 = scmp.ne.s32.totalorder %s182, %s198
      %p200 = scmp.eq.s32.totalorder %s22, 0
      %p201 = por %p199, %p200
      %p202 = scmp.le.s32.totalorder 1, %s16
      %p203 = scmp.lt.s32.totalorder %s16, 3
      %p204 = pnand %p202, %p203
      %p205 = pneg %p204
      // Predicated region
      $region9: #{tpu_custom_call.1} parent=5 // pred_check
        _
      $region10: #{tpu_custom_call.1} parent=5 // pred_check_branch
        %207 = sbr.rel (%p204) target = $region12
      $region11: #{tpu_custom_call.1} parent=5 // pred_region
        %s208 = ssub.s32 %s16, 1
        // Predicated region
        $region13: #{tpu_custom_call.1} parent=11 // pred_check
          %p209 = pneg %p63
        $region14: #{tpu_custom_call.1} parent=11 // pred_check_branch
          %211 = sbr.rel (%p209) target = $region16
        $region15: #{tpu_custom_call.1} parent=11 // pred_region
          _
        $region16: #{tpu_custom_call.1} parent=11 // pred_fallthru
          _
        // Predicated region
        $region17: #{tpu_custom_call.1} parent=11 // pred_check
          %p212 = pneg %p84
        $region18: #{tpu_custom_call.1} parent=11 // pred_check_branch
          %214 = sbr.rel (%p212) target = $region20
        $region19: #{tpu_custom_call.1} parent=11 // pred_region
          _
        $region20: #{tpu_custom_call.1} parent=11 // pred_fallthru
          _
        // Predicated region
        $region21: #{tpu_custom_call.1} parent=11 // pred_check
          %p215 = pneg %p105
        $region22: #{tpu_custom_call.1} parent=11 // pred_check_branch
          %217 = sbr.rel (%p215) target = $region24
        $region23: #{tpu_custom_call.1} parent=11 // pred_region
          _
        $region24: #{tpu_custom_call.1} parent=11 // pred_fallthru
          _
        // Predicated region
        $region25: #{tpu_custom_call.1} parent=11 // pred_check
          %p218 = pneg %p126
        $region26: #{tpu_custom_call.1} parent=11 // pred_check_branch
          %220 = sbr.rel (%p218) target = $region28
        $region27: #{tpu_custom_call.1} parent=11 // pred_region
          _
        $region28: #{tpu_custom_call.1} parent=11 // pred_fallthru
          _
        // Predicated region
        $region29: #{tpu_custom_call.1} parent=11 // pred_check
          %p221 = pneg %p147
        $region30: #{tpu_custom_call.1} parent=11 // pred_check_branch
          %223 = sbr.rel (%p221) target = $region32
        $region31: #{tpu_custom_call.1} parent=11 // pred_region
          _
        $region32: #{tpu_custom_call.1} parent=11 // pred_fallthru
          _
        // Predicated region
        $region33: #{tpu_custom_call.1} parent=11 // pred_check
          %p224 = pneg %p168
        $region34: #{tpu_custom_call.1} parent=11 // pred_check_branch
          %226 = sbr.rel (%p224) target = $region36
        $region35: #{tpu_custom_call.1} parent=11 // pred_region
          _
        $region36: #{tpu_custom_call.1} parent=11 // pred_fallthru
          _
      $region12: #{tpu_custom_call.1} parent=5 // pred_fallthru
        _
      %p227 = scmp.lt.s32.totalorder %s16, 2
      // Predicated region
      $region37: #{tpu_custom_call.1} parent=5 // pred_check
        %p228 = pneg %p227
      $region38: #{tpu_custom_call.1} parent=5 // pred_check_branch
        %230 = sbr.rel (%p228) target = $region40
      $region39: #{tpu_custom_call.1} parent=5 // pred_region
        // Predicated region
        $region41: #{tpu_custom_call.1} parent=39 // pred_check
          %p231 = pneg %p36
        $region42: #{tpu_custom_call.1} parent=39 // pred_check_branch
          %233 = sbr.rel (%p231) target = $region44
        $region43: #{tpu_custom_call.1} parent=39 // pred_region
          %p234 = scmp.lt.s32.totalorder %s16, 1
          %s235 = scalar_select %p234, %s16, 1
          %s236 = smul.addr %s235, 32
          %s237 = smul.addr %s236, 4
          %s238 = scalar_lea.vmem %s0, %s237
        $region44: #{tpu_custom_call.1} parent=39 // pred_fallthru
          _
      $region40: #{tpu_custom_call.1} parent=5 // pred_fallthru
        _
      %p239 = scmp.le.s32.totalorder 1, %s16
      %p240 = scmp.lt.s32.totalorder %s16, 3
      %p241 = pnand %p239, %p240
      %p242 = pneg %p241
      // Predicated region
      $region45: #{tpu_custom_call.1} parent=5 // pred_check
        _
      $region46: #{tpu_custom_call.1} parent=5 // pred_check_branch
        %244 = sbr.rel (%p241) target = $region48
      $region47: #{tpu_custom_call.1} parent=5 // pred_region
        %s245 = ssub.s32 %s16, 1
        %p246 = scmp.lt.s32.totalorder %s21, 1
        %s247 = scalar_select %p246, %s21, 1
        %s248 = smul.addr %s247, 32
        %s249 = smul.addr %s248, 4
        %s250 = scalar_lea.vmem %s0, %s249
        %p251 = pneg %p42
        %p252 = pneg %p39
        %p253 = pneg %p63
        %p254 = pneg %p60
        %p255 = pneg %p84
        %p256 = pneg %p81
        %p257 = pneg %p105
        %p258 = pneg %p102
        %p259 = pneg %p126
        %p260 = pneg %p123
        %p261 = pneg %p147
        %p262 = pneg %p144
        %p263 = pneg %p168
        %p264 = pneg %p165
        %p265 = pneg %p194
        %p266 = pneg %p191
        %s267 = sand.u32 %s181, 1
        %s268 = scalar_lea.sflag [#allocation4], %s267
        %s269 = sand.u32 %s181, 1
        %s270 = smul.addr %s269, 128
        %s271 = scalar_lea.vmem [#allocation3], %s270
        %p272 = scmp.lt.s32.totalorder %s21, 1
        %s273 = scalar_select %p272, %s21, 1
        %s274 = smul.addr %s273, 32
        %s275 = smul.addr %s274, 4
        %s276 = scalar_lea.vmem %s0, %s275
        %v278 = vld [vmem:[%s276] sm:$0xf]
        %v279 = vld [vmem:[%s276 + $0x4] sm:$0xf]
        %v280 = vld [vmem:[%s276 + $0x8] sm:$0xf]
        %v281 = vld [vmem:[%s276 + $0xc] sm:$0xf]
        %v282 = vld [vmem:[%s276 + $0x10] sm:$0xf]
        %v283 = vld [vmem:[%s276 + $0x14] sm:$0xf]
        %v284 = vld [vmem:[%s276 + $0x18] sm:$0xf]
        %v285 = vld [vmem:[%s276 + $0x1c] sm:$0xf]
        %v286 = vld [vmem:[%s276 + $0x20] sm:$0xf]
        %v287 = vld [vmem:[%s276 + $0x24] sm:$0xf]
        %v288 = vld [vmem:[%s276 + $0x28] sm:$0xf]
        %v289 = vld [vmem:[%s276 + $0x2c] sm:$0xf]
        %v290 = vld [vmem:[%s276 + $0x30] sm:$0xf]
        %v291 = vld [vmem:[%s276 + $0x34] sm:$0xf]
        %v292 = vld [vmem:[%s276 + $0x38] sm:$0xf]
        %v293 = vld [vmem:[%s276 + $0x3c] sm:$0xf]
        %v294 = vld [vmem:[%s276 + $0x40] sm:$0xf]
        %v295 = vld [vmem:[%s276 + $0x44] sm:$0xf]
        %v296 = vld [vmem:[%s276 + $0x48] sm:$0xf]
        %v297 = vld [vmem:[%s276 + $0x4c] sm:$0xf]
        %v298 = vld [vmem:[%s276 + $0x50] sm:$0xf]
        %v299 = vld [vmem:[%s276 + $0x54] sm:$0xf]
        %v300 = vld [vmem:[%s276 + $0x58] sm:$0xf]
        %v301 = vld [vmem:[%s276 + $0x5c] sm:$0xf]
        %v302 = vld [vmem:[%s276 + $0x60] sm:$0xf]
        %v303 = vld [vmem:[%s276 + $0x64] sm:$0xf]
        %v304 = vld [vmem:[%s276 + $0x68] sm:$0xf]
        %v305 = vld [vmem:[%s276 + $0x6c] sm:$0xf]
        %v306 = vld [vmem:[%s276 + $0x70] sm:$0xf]
        %v307 = vld [vmem:[%s276 + $0x74] sm:$0xf]
        %v308 = vld [vmem:[%s276 + $0x78] sm:$0xf]
        %v309 = vld [vmem:[%s276 + $0x7c] sm:$0xf]
        %vm310 = vcmask 97280
        %311 = vst.msk [vmem:[#allocation2] sm:$0xff] %vm310, 0
        %312 = vst.msk [vmem:[#allocation2 + $0x8] sm:$0xff] %vm310, 0
        %313 = vst.msk [vmem:[#allocation2 + $0x10] sm:$0xff] %vm310, 0
        %314 = vst.msk [vmem:[#allocation2 + $0x18] sm:$0xff] %vm310, 0
        %315 = vst.msk [vmem:[#allocation2 + $0x20] sm:$0xff] %vm310, 0
        %316 = vst.msk [vmem:[#allocation2 + $0x28] sm:$0xff] %vm310, 0
        %317 = vst.msk [vmem:[#allocation2 + $0x30] sm:$0xff] %vm310, 0
        %318 = vst.msk [vmem:[#allocation2 + $0x38] sm:$0xff] %vm310, 0
        %319 = vst.msk [vmem:[#allocation2 + $0x40] sm:$0xff] %vm310, 0
        %320 = vst.msk [vmem:[#allocation2 + $0x48] sm:$0xff] %vm310, 0
        %321 = vst.msk [vmem:[#allocation2 + $0x50] sm:$0xff] %vm310, 0
        %322 = vst.msk [vmem:[#allocation2 + $0x58] sm:$0xff] %vm310, 0
        %323 = vst.msk [vmem:[#allocation2 + $0x60] sm:$0xff] %vm310, 0
        %324 = vst.msk [vmem:[#allocation2 + $0x68] sm:$0xff] %vm310, 0
        %325 = vst.msk [vmem:[#allocation2 + $0x70] sm:$0xff] %vm310, 0
        %326 = vst.msk [vmem:[#allocation2 + $0x78] sm:$0xff] %vm310, 0
        %327 = vst.msk [vmem:[#allocation2 + $0x80] sm:$0xff] %vm310, 0
        %328 = vst.msk [vmem:[#allocation2 + $0x88] sm:$0xff] %vm310, 0
        %v361 = vunpack.c.l.b16 %v278
        %v362 = vunpack.c.l.b16 %v279
        %v363 = vunpack.c.l.b16 %v280
        %v364 = vunpack.c.l.b16 %v281
        %v365 = vunpack.c.l.b16 %v282
        %v366 = vunpack.c.l.b16 %v283
        %v367 = vunpack.c.l.b16 %v284
        %v368 = vunpack.c.l.b16 %v285
        %v369 = vunpack.c.l.b16 %v286
        %v370 = vunpack.c.l.b16 %v287
        %v371 = vunpack.c.l.b16 %v288
        %v372 = vunpack.c.l.b16 %v289
        %v373 = vunpack.c.l.b16 %v290
        %v374 = vunpack.c.l.b16 %v291
        %v375 = vunpack.c.l.b16 %v292
        %v376 = vunpack.c.l.b16 %v293
        %v377 = vunpack.c.l.b16 %v294
        %v378 = vunpack.c.l.b16 %v295
        %v379 = vunpack.c.l.b16 %v296
        %v380 = vunpack.c.l.b16 %v297
        %v381 = vunpack.c.l.b16 %v298
        %v382 = vunpack.c.l.b16 %v299
        %v383 = vunpack.c.l.b16 %v300
        %v384 = vunpack.c.l.b16 %v301
        %v385 = vunpack.c.l.b16 %v302
        %v386 = vunpack.c.l.b16 %v303
        %v387 = vunpack.c.l.b16 %v304
        %v388 = vunpack.c.l.b16 %v305
        %v389 = vunpack.c.l.b16 %v306
        %v390 = vunpack.c.l.b16 %v307
        %v391 = vunpack.c.l.b16 %v308
        %v392 = vunpack.c.l.b16 %v309
        %v393 = vpack.c.b16 %v362, %v361
        %v394 = vpack.c.b16 %v364, %v363
        %v395 = vpack.c.b16 %v366, %v365
        %v396 = vpack.c.b16 %v368, %v367
        %v397 = vpack.c.b16 %v370, %v369
        %v398 = vpack.c.b16 %v372, %v371
        %v399 = vpack.c.b16 %v374, %v373
        %v400 = vpack.c.b16 %v376, %v375
        %v401 = vpack.c.b16 %v378, %v377
        %v402 = vpack.c.b16 %v380, %v379
        %v403 = vpack.c.b16 %v382, %v381
        %v404 = vpack.c.b16 %v384, %v383
        %v405 = vpack.c.b16 %v386, %v385
        %v406 = vpack.c.b16 %v388, %v387
        %v407 = vpack.c.b16 %v390, %v389
        %v408 = vpack.c.b16 %v392, %v391
        %v410 = vshrl.u32 %v393, 16
        %v412 = vrot.slane %v410, 7
        %v413 = vshll.u32 %v393, 16
        %v415 = vor.u32 %v412, %v413
        %v417 = vshrl.u32 %v394, 16
        %v419 = vrot.slane %v417, 7
        %v420 = vshll.u32 %v394, 16
        %v422 = vor.u32 %v419, %v420
        %v424 = vshrl.u32 %v395, 16
        %v426 = vrot.slane %v424, 7
        %v427 = vshll.u32 %v395, 16
        %v429 = vor.u32 %v426, %v427
        %v431 = vshrl.u32 %v396, 16
        %v433 = vrot.slane %v431, 7
        %v434 = vshll.u32 %v396, 16
        %v436 = vor.u32 %v433, %v434
        %v438 = vshrl.u32 %v397, 16
        %v440 = vrot.slane %v438, 7
        %v441 = vshll.u32 %v397, 16
        %v443 = vor.u32 %v440, %v441
        %v445 = vshrl.u32 %v398, 16
        %v447 = vrot.slane %v445, 7
        %v448 = vshll.u32 %v398, 16
        %v450 = vor.u32 %v447, %v448
        %v452 = vshrl.u32 %v399, 16
        %v454 = vrot.slane %v452, 7
        %v455 = vshll.u32 %v399, 16
        %v457 = vor.u32 %v454, %v455
        %v459 = vshrl.u32 %v400, 16
        %v461 = vrot.slane %v459, 7
        %v462 = vshll.u32 %v400, 16
        %v464 = vor.u32 %v461, %v462
        %v466 = vshrl.u32 %v401, 16
        %v468 = vrot.slane %v466, 7
        %v469 = vshll.u32 %v401, 16
        %v471 = vor.u32 %v468, %v469
        %v473 = vshrl.u32 %v402, 16
        %v475 = vrot.slane %v473, 7
        %v476 = vshll.u32 %v402, 16
        %v478 = vor.u32 %v475, %v476
        %v480 = vshrl.u32 %v403, 16
        %v482 = vrot.slane %v480, 7
        %v483 = vshll.u32 %v403, 16
        %v485 = vor.u32 %v482, %v483
        %v487 = vshrl.u32 %v404, 16
        %v489 = vrot.slane %v487, 7
        %v490 = vshll.u32 %v404, 16
        %v492 = vor.u32 %v489, %v490
        %v494 = vshrl.u32 %v405, 16
        %v496 = vrot.slane %v494, 7
        %v497 = vshll.u32 %v405, 16
        %v499 = vor.u32 %v496, %v497
        %v501 = vshrl.u32 %v406, 16
        %v503 = vrot.slane %v501, 7
        %v504 = vshll.u32 %v406, 16
        %v506 = vor.u32 %v503, %v504
        %v508 = vshrl.u32 %v407, 16
        %v510 = vrot.slane %v508, 7
        %v511 = vshll.u32 %v407, 16
        %v513 = vor.u32 %v510, %v511
        %v515 = vshrl.u32 %v408, 16
        %v517 = vrot.slane %v515, 7
        %v518 = vshll.u32 %v408, 16
        %v520 = vor.u32 %v517, %v518
        %s537 = scalar_lea.vmem [#allocation2], 8
        %vm538 = vcmask 31744
        %vm539 = vsmask.f32 7938
        %vm540 = vmand %vm538, %vm539
        %v541 = vld [vmem:[%s537] sm:$0xff]
        %v542 = vsel %vm540, %v415, %v541
        %543 = vst [vmem:[%s537] sm:$0xff] %v542
        %v544 = vld [vmem:[%s537 + $0x8] sm:$0xff]
        %v545 = vsel %vm540, %v422, %v544
        %546 = vst [vmem:[%s537 + $0x8] sm:$0xff] %v545
        %v547 = vld [vmem:[%s537 + $0x10] sm:$0xff]
        %v548 = vsel %vm540, %v429, %v547
        %549 = vst [vmem:[%s537 + $0x10] sm:$0xff] %v548
        %v550 = vld [vmem:[%s537 + $0x18] sm:$0xff]
        %v551 = vsel %vm540, %v436, %v550
        %552 = vst [vmem:[%s537 + $0x18] sm:$0xff] %v551
        %v553 = vld [vmem:[%s537 + $0x20] sm:$0xff]
        %v554 = vsel %vm540, %v443, %v553
        %555 = vst [vmem:[%s537 + $0x20] sm:$0xff] %v554
        %v556 = vld [vmem:[%s537 + $0x28] sm:$0xff]
        %v557 = vsel %vm540, %v450, %v556
        %558 = vst [vmem:[%s537 + $0x28] sm:$0xff] %v557
        %v559 = vld [vmem:[%s537 + $0x30] sm:$0xff]
        %v560 = vsel %vm540, %v457, %v559
        %561 = vst [vmem:[%s537 + $0x30] sm:$0xff] %v560
        %v562 = vld [vmem:[%s537 + $0x38] sm:$0xff]
        %v563 = vsel %vm540, %v464, %v562
        %564 = vst [vmem:[%s537 + $0x38] sm:$0xff] %v563
        %v565 = vld [vmem:[%s537 + $0x40] sm:$0xff]
        %v566 = vsel %vm540, %v471, %v565
        %567 = vst [vmem:[%s537 + $0x40] sm:$0xff] %v566
        %v568 = vld [vmem:[%s537 + $0x48] sm:$0xff]
        %v569 = vsel %vm540, %v478, %v568
        %570 = vst [vmem:[%s537 + $0x48] sm:$0xff] %v569
        %v571 = vld [vmem:[%s537 + $0x50] sm:$0xff]
        %v572 = vsel %vm540, %v485, %v571
        %573 = vst [vmem:[%s537 + $0x50] sm:$0xff] %v572
        %v574 = vld [vmem:[%s537 + $0x58] sm:$0xff]
        %v575 = vsel %vm540, %v492, %v574
        %576 = vst [vmem:[%s537 + $0x58] sm:$0xff] %v575
        %v577 = vld [vmem:[%s537 + $0x60] sm:$0xff]
        %v578 = vsel %vm540, %v499, %v577
        %579 = vst [vmem:[%s537 + $0x60] sm:$0xff] %v578
        %v580 = vld [vmem:[%s537 + $0x68] sm:$0xff]
        %v581 = vsel %vm540, %v506, %v580
        %582 = vst [vmem:[%s537 + $0x68] sm:$0xff] %v581
        %v583 = vld [vmem:[%s537 + $0x70] sm:$0xff]
        %v584 = vsel %vm540, %v513, %v583
        %585 = vst [vmem:[%s537 + $0x70] sm:$0xff] %v584
        %v586 = vld [vmem:[%s537 + $0x78] sm:$0xff]
        %v587 = vsel %vm540, %v520, %v586
        %588 = vst [vmem:[%s537 + $0x78] sm:$0xff] %v587
        %589 = vrot.lane.b32.xlu0 %v393, 4
        %v590 = vpop.permute.xlu0 %589
        %591 = vrot.lane.b32.xlu0 %v394, 4
        %v592 = vpop.permute.xlu0 %591
        %593 = vrot.lane.b32.xlu0 %v395, 4
        %v594 = vpop.permute.xlu0 %593
        %595 = vrot.lane.b32.xlu0 %v396, 4
        %v596 = vpop.permute.xlu0 %595
        %597 = vrot.lane.b32.xlu0 %v397, 4
        %v598 = vpop.permute.xlu0 %597
        %599 = vrot.lane.b32.xlu0 %v398, 4
        %v600 = vpop.permute.xlu0 %599
        %601 = vrot.lane.b32.xlu0 %v399, 4
        %v602 = vpop.permute.xlu0 %601
        %603 = vrot.lane.b32.xlu0 %v400, 4
        %v604 = vpop.permute.xlu0 %603
        %605 = vrot.lane.b32.xlu0 %v401, 4
        %v606 = vpop.permute.xlu0 %605
        %607 = vrot.lane.b32.xlu0 %v402, 4
        %v608 = vpop.permute.xlu0 %607
        %609 = vrot.lane.b32.xlu0 %v403, 4
        %v610 = vpop.permute.xlu0 %609
        %611 = vrot.lane.b32.xlu0 %v404, 4
        %v612 = vpop.permute.xlu0 %611
        %613 = vrot.lane.b32.xlu0 %v405, 4
        %v614 = vpop.permute.xlu0 %613
        %615 = vrot.lane.b32.xlu0 %v406, 4
        %v616 = vpop.permute.xlu0 %615
        %617 = vrot.lane.b32.xlu0 %v407, 4
        %v618 = vpop.permute.xlu0 %617
        %619 = vrot.lane.b32.xlu0 %v408, 4
        %v620 = vpop.permute.xlu0 %619
        %vm637 = vcmask 64544
        %638 = vst.msk [vmem:[%s537] sm:$0xff] %vm637, %v590
        %639 = vst.msk [vmem:[%s537 + $0x8] sm:$0xff] %vm637, %v592
        %640 = vst.msk [vmem:[%s537 + $0x10] sm:$0xff] %vm637, %v594
        %641 = vst.msk [vmem:[%s537 + $0x18] sm:$0xff] %vm637, %v596
        %642 = vst.msk [vmem:[%s537 + $0x20] sm:$0xff] %vm637, %v598
        %643 = vst.msk [vmem:[%s537 + $0x28] sm:$0xff] %vm637, %v600
        %644 = vst.msk [vmem:[%s537 + $0x30] sm:$0xff] %vm637, %v602
        %645 = vst.msk [vmem:[%s537 + $0x38] sm:$0xff] %vm637, %v604
        %646 = vst.msk [vmem:[%s537 + $0x40] sm:$0xff] %vm637, %v606
        %647 = vst.msk [vmem:[%s537 + $0x48] sm:$0xff] %vm637, %v608
        %648 = vst.msk [vmem:[%s537 + $0x50] sm:$0xff] %vm637, %v610
        %649 = vst.msk [vmem:[%s537 + $0x58] sm:$0xff] %vm637, %v612
        %650 = vst.msk [vmem:[%s537 + $0x60] sm:$0xff] %vm637, %v614
        %651 = vst.msk [vmem:[%s537 + $0x68] sm:$0xff] %vm637, %v616
        %652 = vst.msk [vmem:[%s537 + $0x70] sm:$0xff] %vm637, %v618
        %653 = vst.msk [vmem:[%s537 + $0x78] sm:$0xff] %vm637, %v620
        %v654 = vrot.slane %v413, 1
        %v655 = vor.u32 %v410, %v654
        %v656 = vrot.slane %v420, 1
        %v657 = vor.u32 %v417, %v656
        %v658 = vrot.slane %v427, 1
        %v659 = vor.u32 %v424, %v658
        %v660 = vrot.slane %v434, 1
        %v661 = vor.u32 %v431, %v660
        %v662 = vrot.slane %v441, 1
        %v663 = vor.u32 %v438, %v662
        %v664 = vrot.slane %v448, 1
        %v665 = vor.u32 %v445, %v664
        %v666 = vrot.slane %v455, 1
        %v667 = vor.u32 %v452, %v666
        %v668 = vrot.slane %v462, 1
        %v669 = vor.u32 %v459, %v668
        %v670 = vrot.slane %v469, 1
        %v671 = vor.u32 %v466, %v670
        %v672 = vrot.slane %v476, 1
        %v673 = vor.u32 %v473, %v672
        %v674 = vrot.slane %v483, 1
        %v675 = vor.u32 %v480, %v674
        %v676 = vrot.slane %v490, 1
        %v677 = vor.u32 %v487, %v676
        %v678 = vrot.slane %v497, 1
        %v679 = vor.u32 %v494, %v678
        %v680 = vrot.slane %v504, 1
        %v681 = vor.u32 %v501, %v680
        %v682 = vrot.slane %v511, 1
        %v683 = vor.u32 %v508, %v682
        %v684 = vrot.slane %v518, 1
        %v685 = vor.u32 %v515, %v684
        %686 = vrot.lane.b32.xlu0 %v655, 8
        %v687 = vpop.permute.xlu0 %686
        %688 = vrot.lane.b32.xlu0 %v657, 8
        %v689 = vpop.permute.xlu0 %688
        %690 = vrot.lane.b32.xlu0 %v659, 8
        %v691 = vpop.permute.xlu0 %690
        %692 = vrot.lane.b32.xlu0 %v661, 8
        %v693 = vpop.permute.xlu0 %692
        %694 = vrot.lane.b32.xlu0 %v663, 8
        %v695 = vpop.permute.xlu0 %694
        %696 = vrot.lane.b32.xlu0 %v665, 8
        %v697 = vpop.permute.xlu0 %696
        %698 = vrot.lane.b32.xlu0 %v667, 8
        %v699 = vpop.permute.xlu0 %698
        %700 = vrot.lane.b32.xlu0 %v669, 8
        %v701 = vpop.permute.xlu0 %700
        %702 = vrot.lane.b32.xlu0 %v671, 8
        %v703 = vpop.permute.xlu0 %702
        %704 = vrot.lane.b32.xlu0 %v673, 8
        %v705 = vpop.permute.xlu0 %704
        %706 = vrot.lane.b32.xlu0 %v675, 8
        %v707 = vpop.permute.xlu0 %706
        %708 = vrot.lane.b32.xlu0 %v677, 8
        %v709 = vpop.permute.xlu0 %708
        %710 = vrot.lane.b32.xlu0 %v679, 8
        %v711 = vpop.permute.xlu0 %710
        %712 = vrot.lane.b32.xlu0 %v681, 8
        %v713 = vpop.permute.xlu0 %712
        %714 = vrot.lane.b32.xlu0 %v683, 8
        %v715 = vpop.permute.xlu0 %714
        %716 = vrot.lane.b32.xlu0 %v685, 8
        %v717 = vpop.permute.xlu0 %716
        %vm734 = vcmask 97344
        %vm735 = vsmask.f32 7424
        %vm736 = vmand %vm734, %vm735
        %v737 = vld [vmem:[%s537] sm:$0xff]
        %v738 = vsel %vm736, %v687, %v737
        %739 = vst [vmem:[%s537] sm:$0xff] %v738
        %v740 = vld [vmem:[%s537 + $0x8] sm:$0xff]
        %v741 = vsel %vm736, %v689, %v740
        %742 = vst [vmem:[%s537 + $0x8] sm:$0xff] %v741
        %v743 = vld [vmem:[%s537 + $0x10] sm:$0xff]
        %v744 = vsel %vm736, %v691, %v743
        %745 = vst [vmem:[%s537 + $0x10] sm:$0xff] %v744
        %v746 = vld [vmem:[%s537 + $0x18] sm:$0xff]
        %v747 = vsel %vm736, %v693, %v746
        %748 = vst [vmem:[%s537 + $0x18] sm:$0xff] %v747
        %v749 = vld [vmem:[%s537 + $0x20] sm:$0xff]
        %v750 = vsel %vm736, %v695, %v749
        %751 = vst [vmem:[%s537 + $0x20] sm:$0xff] %v750
        %v752 = vld [vmem:[%s537 + $0x28] sm:$0xff]
        %v753 = vsel %vm736, %v697, %v752
        %754 = vst [vmem:[%s537 + $0x28] sm:$0xff] %v753
        %v755 = vld [vmem:[%s537 + $0x30] sm:$0xff]
        %v756 = vsel %vm736, %v699, %v755
        %757 = vst [vmem:[%s537 + $0x30] sm:$0xff] %v756
        %v758 = vld [vmem:[%s537 + $0x38] sm:$0xff]
        %v759 = vsel %vm736, %v701, %v758
        %760 = vst [vmem:[%s537 + $0x38] sm:$0xff] %v759
        %v761 = vld [vmem:[%s537 + $0x40] sm:$0xff]
        %v762 = vsel %vm736, %v703, %v761
        %763 = vst [vmem:[%s537 + $0x40] sm:$0xff] %v762
        %v764 = vld [vmem:[%s537 + $0x48] sm:$0xff]
        %v765 = vsel %vm736, %v705, %v764
        %766 = vst [vmem:[%s537 + $0x48] sm:$0xff] %v765
        %v767 = vld [vmem:[%s537 + $0x50] sm:$0xff]
        %v768 = vsel %vm736, %v707, %v767
        %769 = vst [vmem:[%s537 + $0x50] sm:$0xff] %v768
        %v770 = vld [vmem:[%s537 + $0x58] sm:$0xff]
        %v771 = vsel %vm736, %v709, %v770
        %772 = vst [vmem:[%s537 + $0x58] sm:$0xff] %v771
        %v773 = vld [vmem:[%s537 + $0x60] sm:$0xff]
        %v774 = vsel %vm736, %v711, %v773
        %775 = vst [vmem:[%s537 + $0x60] sm:$0xff] %v774
        %v776 = vld [vmem:[%s537 + $0x68] sm:$0xff]
        %v777 = vsel %vm736, %v713, %v776
        %778 = vst [vmem:[%s537 + $0x68] sm:$0xff] %v777
        %v779 = vld [vmem:[%s537 + $0x70] sm:$0xff]
        %v780 = vsel %vm736, %v715, %v779
        %781 = vst [vmem:[%s537 + $0x70] sm:$0xff] %v780
        %v782 = vld [vmem:[%s537 + $0x78] sm:$0xff]
        %v783 = vsel %vm736, %v717, %v782
        %784 = vst [vmem:[%s537 + $0x78] sm:$0xff] %v783
        %v785 = vld [vmem:[#allocation2] sm:$0xff]
        %v786 = vld [vmem:[#allocation2 + $0x8] sm:$0xff]
        %v787 = vld [vmem:[#allocation2 + $0x10] sm:$0xff]
        %v788 = vld [vmem:[#allocation2 + $0x18] sm:$0xff]
        %v789 = vld [vmem:[#allocation2 + $0x20] sm:$0xff]
        %v790 = vld [vmem:[#allocation2 + $0x28] sm:$0xff]
        %v791 = vld [vmem:[#allocation2 + $0x30] sm:$0xff]
        %v792 = vld [vmem:[#allocation2 + $0x38] sm:$0xff]
        %v793 = vld [vmem:[#allocation2 + $0x40] sm:$0xff]
        %v794 = vld [vmem:[#allocation2 + $0x48] sm:$0xff]
        %v795 = vld [vmem:[#allocation2 + $0x50] sm:$0xff]
        %v796 = vld [vmem:[#allocation2 + $0x58] sm:$0xff]
        %v797 = vld [vmem:[#allocation2 + $0x60] sm:$0xff]
        %v798 = vld [vmem:[#allocation2 + $0x68] sm:$0xff]
        %v799 = vld [vmem:[#allocation2 + $0x70] sm:$0xff]
        %v800 = vld [vmem:[#allocation2 + $0x78] sm:$0xff]
        %v801 = vld [vmem:[%s1] sm:$0xff]
        %v802 = vld [vmem:[%s1 + $0x8] sm:$0x33]
        %v803 = vld [vmem:[%s537] sm:$0xff]
        %v804 = vld [vmem:[%s537 + $0x8] sm:$0xff]
        %v805 = vld [vmem:[%s537 + $0x10] sm:$0xff]
        %v806 = vld [vmem:[%s537 + $0x18] sm:$0xff]
        %v807 = vld [vmem:[%s537 + $0x20] sm:$0xff]
        %v808 = vld [vmem:[%s537 + $0x28] sm:$0xff]
        %v809 = vld [vmem:[%s537 + $0x30] sm:$0xff]
        %v810 = vld [vmem:[%s537 + $0x38] sm:$0xff]
        %v811 = vld [vmem:[%s537 + $0x40] sm:$0xff]
        %v812 = vld [vmem:[%s537 + $0x48] sm:$0xff]
        %v813 = vld [vmem:[%s537 + $0x50] sm:$0xff]
        %v814 = vld [vmem:[%s537 + $0x58] sm:$0xff]
        %v815 = vld [vmem:[%s537 + $0x60] sm:$0xff]
        %v816 = vld [vmem:[%s537 + $0x68] sm:$0xff]
        %v817 = vld [vmem:[%s537 + $0x70] sm:$0xff]
        %v818 = vld [vmem:[%s537 + $0x78] sm:$0xff]
        %s819 = scalar_lea.vmem %s1, 16
        %v820 = vld [vmem:[%s819] sm:$0xff]
        %v821 = vld [vmem:[%s819 + $0x8] sm:$0x33]
        %v824 = vunpack.c.l.b16 %v820
        %v825 = vunpack.c.h.b16 %v820
        %v826 = vunpack.c.l.b16 %v821
        %v827 = vunpack.c.h.b16 %v821
        %v828 = vpack.c.b16 %v826, %v824
        %v829 = vpack.c.b16 %v827, %v825
        %v831 = vsel %vm310, %v803, 0
        %v834 = vsel %vm310, %v804, 0
        %v837 = vsel %vm310, %v805, 0
        %v840 = vsel %vm310, %v806, 0
        %v843 = vsel %vm310, %v807, 0
        %v846 = vsel %vm310, %v808, 0
        %v849 = vsel %vm310, %v809, 0
        %v852 = vsel %vm310, %v810, 0
        %v855 = vsel %vm310, %v811, 0
        %v858 = vsel %vm310, %v812, 0
        %v861 = vsel %vm310, %v813, 0
        %v864 = vsel %vm310, %v814, 0
        %v867 = vsel %vm310, %v815, 0
        %v870 = vsel %vm310, %v816, 0
        %v873 = vsel %vm310, %v817, 0
        %v876 = vsel %vm310, %v818, 0
        %vm878 = vcmask 1045504
        %v880 = vsel %vm878, %v828, 0
        %v883 = vsel %vm878, %v829, 0
        %885 = vmatprep.subr.bf16.mxu0 %v883
        %886 = vmatpush1.bf16.msra.mxu0 %v880
        %887 = vmatprep.subr.bf16.mxu0 0
        %888 = vmatpush1.bf16.msra.mxu0 0
        %889 = vmatprep.subr.bf16.mxu0 0
        %890 = vmatpush1.bf16.msra.mxu0 0
        %891 = vmatprep.subr.bf16.mxu0 0
        %892 = vmatpush1.bf16.msra.mxu0 0
        %893 = vmatprep.subr.bf16.mxu0 0
        %894 = vmatpush1.bf16.msra.mxu0 0
        %895 = vmatprep.subr.bf16.mxu0 0
        %896 = vmatpush1.bf16.msra.mxu0 0
        %897 = vmatprep.subr.bf16.mxu0 0
        %898 = vmatpush1.bf16.msra.mxu0 0
        %899 = vmatprep.subr.bf16.mxu0 0
        %900 = vmatpush1.bf16.msra.mxu0 0
        %901 = vmatprep.subr.bf16.mxu0 0
        %902 = vmatpush1.bf16.msra.mxu0 0
        %903 = vmatprep.subr.bf16.mxu0 0
        %904 = vmatpush1.bf16.msra.mxu0 0
        %905 = vmatprep.subr.bf16.mxu0 0
        %906 = vmatpush1.bf16.msra.mxu0 0
        %907 = vmatprep.subr.bf16.mxu0 0
        %908 = vmatpush1.bf16.msra.mxu0 0
        %909 = vmatprep.subr.bf16.mxu0 0
        %910 = vmatpush1.bf16.msra.mxu0 0
        %911 = vmatprep.subr.bf16.mxu0 0
        %912 = vmatpush1.bf16.msra.mxu0 0
        %913 = vmatprep.subr.bf16.mxu0 0
        %914 = vmatpush1.bf16.msra.mxu0 0
        %915 = vmatprep.subr.bf16.mxu0 0
        %916 = vmatpush1.bf16.msra.mxu0 0
        %917 = vmatprep.mubr.bf16.mxu0 0
        %918 = vmatmul.mubr.bf16.gmra.mrb[0].mxu0 %v831
        %v919 = vpop.f32.mrb[0].mxu0
        %v920 = vadd.f32 0.0, %v919
        %v921 = vpop.f32.mrb[0].mxu0
        %v922 = vadd.f32 0.0, %v921
        %v923 = vpop.f32.mrb[0].mxu0
        %v924 = vadd.f32 0.0, %v923
        %v925 = vpop.f32.mrb[0].mxu0
        %v926 = vadd.f32 0.0, %v925
        %927 = vmatprep.mubr.bf16.mxu0 0
        %928 = vmatmul.mubr.bf16.gmra.mrb[0].mxu0 %v834
        %v929 = vpop.f32.mrb[0].mxu0
        %v930 = vadd.f32 0.0, %v929
        %v931 = vpop.f32.mrb[0].mxu0
        %v932 = vadd.f32 0.0, %v931
        %v933 = vpop.f32.mrb[0].mxu0
        %v934 = vadd.f32 0.0, %v933
        %v935 = vpop.f32.mrb[0].mxu0
        %v936 = vadd.f32 0.0, %v935
        %937 = vmatprep.mubr.bf16.mxu0 0
        %938 = vmatmul.mubr.bf16.gmra.mrb[0].mxu0 %v837
        %v939 = vpop.f32.mrb[0].mxu0
        %v940 = vadd.f32 0.0, %v939
        %v941 = vpop.f32.mrb[0].mxu0
        %v942 = vadd.f32 0.0, %v941
        %v943 = vpop.f32.mrb[0].mxu0
        %v944 = vadd.f32 0.0, %v943
        %v945 = vpop.f32.mrb[0].mxu0
        %v946 = vadd.f32 0.0, %v945
        %947 = vmatprep.mubr.bf16.mxu0 0
        %948 = vmatmul.mubr.bf16.gmra.mrb[0].mxu0 %v840
        %v949 = vpop.f32.mrb[0].mxu0
        %v950 = vadd.f32 0.0, %v949
        %v951 = vpop.f32.mrb[0].mxu0
        %v952 = vadd.f32 0.0, %v951
        %v953 = vpop.f32.mrb[0].mxu0
        %v954 = vadd.f32 0.0, %v953
        %v955 = vpop.f32.mrb[0].mxu0
        %v956 = vadd.f32 0.0, %v955
        %957 = vmatprep.mubr.bf16.mxu0 0
        %958 = vmatmul.mubr.bf16.gmra.mrb[0].mxu0 %v843
        %v959 = vpop.f32.mrb[0].mxu0
        %v960 = vadd.f32 0.0, %v959
        %v961 = vpop.f32.mrb[0].mxu0
        %v962 = vadd.f32 0.0, %v961
        %v963 = vpop.f32.mrb[0].mxu0
        %v964 = vadd.f32 0.0, %v963
        %v965 = vpop.f32.mrb[0].mxu0
        %v966 = vadd.f32 0.0, %v965
        %967 = vmatprep.mubr.bf16.mxu0 0
        %968 = vmatmul.mubr.bf16.gmra.mrb[0].mxu0 %v846
        %v969 = vpop.f32.mrb[0].mxu0
        %v970 = vadd.f32 0.0, %v969
        %v971 = vpop.f32.mrb[0].mxu0
        %v972 = vadd.f32 0.0, %v971
        %v973 = vpop.f32.mrb[0].mxu0
        %v974 = vadd.f32 0.0, %v973
        %v975 = vpop.f32.mrb[0].mxu0
        %v976 = vadd.f32 0.0, %v975
        %977 = vmatprep.mubr.bf16.mxu0 0
        %978 = vmatmul.mubr.bf16.gmra.mrb[0].mxu0 %v849
        %v979 = vpop.f32.mrb[0].mxu0
        %v980 = vadd.f32 0.0, %v979
        %v981 = vpop.f32.mrb[0].mxu0
        %v982 = vadd.f32 0.0, %v981
        %v983 = vpop.f32.mrb[0].mxu0
        %v984 = vadd.f32 0.0, %v983
        %v985 = vpop.f32.mrb[0].mxu0
        %v986 = vadd.f32 0.0, %v985
        %987 = vmatprep.mubr.bf16.mxu0 0
        %988 = vmatmul.mubr.bf16.gmra.mrb[0].mxu0 %v852
        %v989 = vpop.f32.mrb[0].mxu0
        %v990 = vadd.f32 0.0, %v989
        %v991 = vpop.f32.mrb[0].mxu0
        %v992 = vadd.f32 0.0, %v991
        %v993 = vpop.f32.mrb[0].mxu0
        %v994 = vadd.f32 0.0, %v993
        %v995 = vpop.f32.mrb[0].mxu0
        %v996 = vadd.f32 0.0, %v995
        %997 = vmatprep.mubr.bf16.mxu0 0
        %998 = vmatmul.mubr.bf16.gmra.mrb[0].mxu0 %v855
        %v999 = vpop.f32.mrb[0].mxu0
        %v1000 = vadd.f32 0.0, %v999
        %v1001 = vpop.f32.mrb[0].mxu0
        %v1002 = vadd.f32 0.0, %v1001
        %v1003 = vpop.f32.mrb[0].mxu0
        %v1004 = vadd.f32 0.0, %v1003
        %v1005 = vpop.f32.mrb[0].mxu0
        %v1006 = vadd.f32 0.0, %v1005
        %1007 = vmatprep.mubr.bf16.mxu0 0
        %1008 = vmatmul.mubr.bf16.gmra.mrb[0].mxu0 %v858
        %v1009 = vpop.f32.mrb[0].mxu0
        %v1010 = vadd.f32 0.0, %v1009
        %v1011 = vpop.f32.mrb[0].mxu0
        %v1012 = vadd.f32 0.0, %v1011
        %v1013 = vpop.f32.mrb[0].mxu0
        %v1014 = vadd.f32 0.0, %v1013
        %v1015 = vpop.f32.mrb[0].mxu0
        %v1016 = vadd.f32 0.0, %v1015
        %1017 = vmatprep.mubr.bf16.mxu0 0
        %1018 = vmatmul.mubr.bf16.gmra.mrb[0].mxu0 %v861
        %v1019 = vpop.f32.mrb[0].mxu0
        %v1020 = vadd.f32 0.0, %v1019
        %v1021 = vpop.f32.mrb[0].mxu0
        %v1022 = vadd.f32 0.0, %v1021
        %v1023 = vpop.f32.mrb[0].mxu0
        %v1024 = vadd.f32 0.0, %v1023
        %v1025 = vpop.f32.mrb[0].mxu0
        %v1026 = vadd.f32 0.0, %v1025
        %1027 = vmatprep.mubr.bf16.mxu0 0
        %1028 = vmatmul.mubr.bf16.gmra.mrb[0].mxu0 %v864
        %v1029 = vpop.f32.mrb[0].mxu0
        %v1030 = vadd.f32 0.0, %v1029
        %v1031 = vpop.f32.mrb[0].mxu0
        %v1032 = vadd.f32 0.0, %v1031
        %v1033 = vpop.f32.mrb[0].mxu0
        %v1034 = vadd.f32 0.0, %v1033
        %v1035 = vpop.f32.mrb[0].mxu0
        %v1036 = vadd.f32 0.0, %v1035
        %1037 = vmatprep.mubr.bf16.mxu0 0
        %1038 = vmatmul.mubr.bf16.gmra.mrb[0].mxu0 %v867
        %v1039 = vpop.f32.mrb[0].mxu0
        %v1040 = vadd.f32 0.0, %v1039
        %v1041 = vpop.f32.mrb[0].mxu0
        %v1042 = vadd.f32 0.0, %v1041
        %v1043 = vpop.f32.mrb[0].mxu0
        %v1044 = vadd.f32 0.0, %v1043
        %v1045 = vpop.f32.mrb[0].mxu0
        %v1046 = vadd.f32 0.0, %v1045
        %1047 = vmatprep.mubr.bf16.mxu0 0
        %1048 = vmatmul.mubr.bf16.gmra.mrb[0].mxu0 %v870
        %v1049 = vpop.f32.mrb[0].mxu0
        %v1050 = vadd.f32 0.0, %v1049
        %v1051 = vpop.f32.mrb[0].mxu0
        %v1052 = vadd.f32 0.0, %v1051
        %v1053 = vpop.f32.mrb[0].mxu0
        %v1054 = vadd.f32 0.0, %v1053
        %v1055 = vpop.f32.mrb[0].mxu0
        %v1056 = vadd.f32 0.0, %v1055
        %1057 = vmatprep.mubr.bf16.mxu0 0
        %1058 = vmatmul.mubr.bf16.gmra.mrb[0].mxu0 %v873
        %v1059 = vpop.f32.mrb[0].mxu0
        %v1060 = vadd.f32 0.0, %v1059
        %v1061 = vpop.f32.mrb[0].mxu0
        %v1062 = vadd.f32 0.0, %v1061
        %v1063 = vpop.f32.mrb[0].mxu0
        %v1064 = vadd.f32 0.0, %v1063
        %v1065 = vpop.f32.mrb[0].mxu0
        %v1066 = vadd.f32 0.0, %v1065
        %1067 = vmatprep.mubr.bf16.mxu0 0
        %1068 = vmatmul.mubr.bf16.gmra.mrb[0].mxu0 %v876
        %v1069 = vpop.f32.mrb[0].mxu0
        %v1070 = vadd.f32 0.0, %v1069
        %v1071 = vpop.f32.mrb[0].mxu0
        %v1072 = vadd.f32 0.0, %v1071
        %v1073 = vpop.f32.mrb[0].mxu0
        %v1074 = vadd.f32 0.0, %v1073
        %v1075 = vpop.f32.mrb[0].mxu0
        %v1076 = vadd.f32 0.0, %v1075
        %1077 = vdwg.mxu0
        %v1080 = vunpack.c.l.b16 %v801
        %v1081 = vunpack.c.h.b16 %v801
        %v1082 = vunpack.c.l.b16 %v802
        %v1083 = vunpack.c.h.b16 %v802
        %v1084 = vpack.c.b16 %v1082, %v1080
        %v1085 = vpack.c.b16 %v1083, %v1081
        %v1087 = vsel %vm310, %v785, 0
        %v1090 = vsel %vm310, %v786, 0
        %v1093 = vsel %vm310, %v787, 0
        %v1096 = vsel %vm310, %v788, 0
        %v1099 = vsel %vm310, %v789, 0
        %v1102 = vsel %vm310, %v790, 0
        %v1105 = vsel %vm310, %v791, 0
        %v1108 = vsel %vm310, %v792, 0
        %v1111 = vsel %vm310, %v793, 0
        %v1114 = vsel %vm310, %v794, 0
        %v1117 = vsel %vm310, %v795, 0
        %v1120 = vsel %vm310, %v796, 0
        %v1123 = vsel %vm310, %v797, 0
        %v1126 = vsel %vm310, %v798, 0
        %v1129 = vsel %vm310, %v799, 0
        %v1132 = vsel %vm310, %v800, 0
        %v1135 = vsel %vm878, %v1084, 0
        %v1138 = vsel %vm878, %v1085, 0
        %1140 = vmatprep.subr.bf16.mxu0 %v1138
        %1141 = vmatpush1.bf16.msra.mxu0 %v1135
        %1142 = vmatprep.subr.bf16.mxu0 0
        %1143 = vmatpush1.bf16.msra.mxu0 0
        %1144 = vmatprep.subr.bf16.mxu0 0
        %1145 = vmatpush1.bf16.msra.mxu0 0
        %1146 = vmatprep.subr.bf16.mxu0 0
        %1147 = vmatpush1.bf16.msra.mxu0 0
        %1148 = vmatprep.subr.bf16.mxu0 0
        %1149 = vmatpush1.bf16.msra.mxu0 0
        %1150 = vmatprep.subr.bf16.mxu0 0
        %1151 = vmatpush1.bf16.msra.mxu0 0
        %1152 = vmatprep.subr.bf16.mxu0 0
        %1153 = vmatpush1.bf16.msra.mxu0 0
        %1154 = vmatprep.subr.bf16.mxu0 0
        %1155 = vmatpush1.bf16.msra.mxu0 0
        %1156 = vmatprep.subr.bf16.mxu0 0
        %1157 = vmatpush1.bf16.msra.mxu0 0
        %1158 = vmatprep.subr.bf16.mxu0 0
        %1159 = vmatpush1.bf16.msra.mxu0 0
        %1160 = vmatprep.subr.bf16.mxu0 0
        %1161 = vmatpush1.bf16.msra.mxu0 0
        %1162 = vmatprep.subr.bf16.mxu0 0
        %1163 = vmatpush1.bf16.msra.mxu0 0
        %1164 = vmatprep.subr.bf16.mxu0 0
        %1165 = vmatpush1.bf16.msra.mxu0 0
        %1166 = vmatprep.subr.bf16.mxu0 0
        %1167 = vmatpush1.bf16.msra.mxu0 0
        %1168 = vmatprep.subr.bf16.mxu0 0
        %1169 = vmatpush1.bf16.msra.mxu0 0
        %1170 = vmatprep.subr.bf16.mxu0 0
        %1171 = vmatpush1.bf16.msra.mxu0 0
        %1172 = vmatprep.mubr.bf16.mxu0 0
        %1173 = vmatmul.mubr.bf16.gmra.mrb[0].mxu0 %v1087
        %v1174 = vpop.f32.mrb[0].mxu0
        %v1175 = vadd.f32 %v920, %v1174
        %v1176 = vpop.f32.mrb[0].mxu0
        %v1177 = vadd.f32 %v922, %v1176
        %v1178 = vpop.f32.mrb[0].mxu0
        %v1179 = vadd.f32 %v924, %v1178
        %v1180 = vpop.f32.mrb[0].mxu0
        %v1181 = vadd.f32 %v926, %v1180
        %1182 = vmatprep.mubr.bf16.mxu0 0
        %1183 = vmatmul.mubr.bf16.gmra.mrb[0].mxu0 %v1090
        %v1184 = vpop.f32.mrb[0].mxu0
        %v1185 = vadd.f32 %v930, %v1184
        %v1186 = vpop.f32.mrb[0].mxu0
        %v1187 = vadd.f32 %v932, %v1186
        %v1188 = vpop.f32.mrb[0].mxu0
        %v1189 = vadd.f32 %v934, %v1188
        %v1190 = vpop.f32.mrb[0].mxu0
        %v1191 = vadd.f32 %v936, %v1190
        %1192 = vmatprep.mubr.bf16.mxu0 0
        %1193 = vmatmul.mubr.bf16.gmra.mrb[0].mxu0 %v1093
        %v1194 = vpop.f32.mrb[0].mxu0
        %v1195 = vadd.f32 %v940, %v1194
        %v1196 = vpop.f32.mrb[0].mxu0
        %v1197 = vadd.f32 %v942, %v1196
        %v1198 = vpop.f32.mrb[0].mxu0
        %v1199 = vadd.f32 %v944, %v1198
        %v1200 = vpop.f32.mrb[0].mxu0
        %v1201 = vadd.f32 %v946, %v1200
        %1202 = vmatprep.mubr.bf16.mxu0 0
        %1203 = vmatmul.mubr.bf16.gmra.mrb[0].mxu0 %v1096
        %v1204 = vpop.f32.mrb[0].mxu0
        %v1205 = vadd.f32 %v950, %v1204
        %v1206 = vpop.f32.mrb[0].mxu0
        %v1207 = vadd.f32 %v952, %v1206
        %v1208 = vpop.f32.mrb[0].mxu0
        %v1209 = vadd.f32 %v954, %v1208
        %v1210 = vpop.f32.mrb[0].mxu0
        %v1211 = vadd.f32 %v956, %v1210
        %1212 = vmatprep.mubr.bf16.mxu0 0
        %1213 = vmatmul.mubr.bf16.gmra.mrb[0].mxu0 %v1099
        %v1214 = vpop.f32.mrb[0].mxu0
        %v1215 = vadd.f32 %v960, %v1214
        %v1216 = vpop.f32.mrb[0].mxu0
        %v1217 = vadd.f32 %v962, %v1216
        %v1218 = vpop.f32.mrb[0].mxu0
        %v1219 = vadd.f32 %v964, %v1218
        %v1220 = vpop.f32.mrb[0].mxu0
        %v1221 = vadd.f32 %v966, %v1220
        %1222 = vmatprep.mubr.bf16.mxu0 0
        %1223 = vmatmul.mubr.bf16.gmra.mrb[0].mxu0 %v1102
        %v1224 = vpop.f32.mrb[0].mxu0
        %v1225 = vadd.f32 %v970, %v1224
        %v1226 = vpop.f32.mrb[0].mxu0
        %v1227 = vadd.f32 %v972, %v1226
        %v1228 = vpop.f32.mrb[0].mxu0
        %v1229 = vadd.f32 %v974, %v1228
        %v1230 = vpop.f32.mrb[0].mxu0
        %v1231 = vadd.f32 %v976, %v1230
        %1232 = vmatprep.mubr.bf16.mxu0 0
        %1233 = vmatmul.mubr.bf16.gmra.mrb[0].mxu0 %v1105
        %v1234 = vpop.f32.mrb[0].mxu0
        %v1235 = vadd.f32 %v980, %v1234
        %v1236 = vpop.f32.mrb[0].mxu0
        %v1237 = vadd.f32 %v982, %v1236
        %v1238 = vpop.f32.mrb[0].mxu0
        %v1239 = vadd.f32 %v984, %v1238
        %v1240 = vpop.f32.mrb[0].mxu0
        %v1241 = vadd.f32 %v986, %v1240
        %1242 = vmatprep.mubr.bf16.mxu0 0
        %1243 = vmatmul.mubr.bf16.gmra.mrb[0].mxu0 %v1108
        %v1244 = vpop.f32.mrb[0].mxu0
        %v1245 = vadd.f32 %v990, %v1244
        %v1246 = vpop.f32.mrb[0].mxu0
        %v1247 = vadd.f32 %v992, %v1246
        %v1248 = vpop.f32.mrb[0].mxu0
        %v1249 = vadd.f32 %v994, %v1248
        %v1250 = vpop.f32.mrb[0].mxu0
        %v1251 = vadd.f32 %v996, %v1250
        %1252 = vmatprep.mubr.bf16.mxu0 0
        %1253 = vmatmul.mubr.bf16.gmra.mrb[0].mxu0 %v1111
        %v1254 = vpop.f32.mrb[0].mxu0
        %v1255 = vadd.f32 %v1000, %v1254
        %v1256 = vpop.f32.mrb[0].mxu0
        %v1257 = vadd.f32 %v1002, %v1256
        %v1258 = vpop.f32.mrb[0].mxu0
        %v1259 = vadd.f32 %v1004, %v1258
        %v1260 = vpop.f32.mrb[0].mxu0
        %v1261 = vadd.f32 %v1006, %v1260
        %1262 = vmatprep.mubr.bf16.mxu0 0
        %1263 = vmatmul.mubr.bf16.gmra.mrb[0].mxu0 %v1114
        %v1264 = vpop.f32.mrb[0].mxu0
        %v1265 = vadd.f32 %v1010, %v1264
        %v1266 = vpop.f32.mrb[0].mxu0
        %v1267 = vadd.f32 %v1012, %v1266
        %v1268 = vpop.f32.mrb[0].mxu0
        %v1269 = vadd.f32 %v1014, %v1268
        %v1270 = vpop.f32.mrb[0].mxu0
        %v1271 = vadd.f32 %v1016, %v1270
        %1272 = vmatprep.mubr.bf16.mxu0 0
        %1273 = vmatmul.mubr.bf16.gmra.mrb[0].mxu0 %v1117
        %v1274 = vpop.f32.mrb[0].mxu0
        %v1275 = vadd.f32 %v1020, %v1274
        %v1276 = vpop.f32.mrb[0].mxu0
        %v1277 = vadd.f32 %v1022, %v1276
        %v1278 = vpop.f32.mrb[0].mxu0
        %v1279 = vadd.f32 %v1024, %v1278
        %v1280 = vpop.f32.mrb[0].mxu0
        %v1281 = vadd.f32 %v1026, %v1280
        %1282 = vmatprep.mubr.bf16.mxu0 0
        %1283 = vmatmul.mubr.bf16.gmra.mrb[0].mxu0 %v1120
        %v1284 = vpop.f32.mrb[0].mxu0
        %v1285 = vadd.f32 %v1030, %v1284
        %v1286 = vpop.f32.mrb[0].mxu0
        %v1287 = vadd.f32 %v1032, %v1286
        %v1288 = vpop.f32.mrb[0].mxu0
        %v1289 = vadd.f32 %v1034, %v1288
        %v1290 = vpop.f32.mrb[0].mxu0
        %v1291 = vadd.f32 %v1036, %v1290
        %1292 = vmatprep.mubr.bf16.mxu0 0
        %1293 = vmatmul.mubr.bf16.gmra.mrb[0].mxu0 %v1123
        %v1294 = vpop.f32.mrb[0].mxu0
        %v1295 = vadd.f32 %v1040, %v1294
        %v1296 = vpop.f32.mrb[0].mxu0
        %v1297 = vadd.f32 %v1042, %v1296
        %v1298 = vpop.f32.mrb[0].mxu0
        %v1299 = vadd.f32 %v1044, %v1298
        %v1300 = vpop.f32.mrb[0].mxu0
        %v1301 = vadd.f32 %v1046, %v1300
        %1302 = vmatprep.mubr.bf16.mxu0 0
        %1303 = vmatmul.mubr.bf16.gmra.mrb[0].mxu0 %v1126
        %v1304 = vpop.f32.mrb[0].mxu0
        %v1305 = vadd.f32 %v1050, %v1304
        %v1306 = vpop.f32.mrb[0].mxu0
        %v1307 = vadd.f32 %v1052, %v1306
        %v1308 = vpop.f32.mrb[0].mxu0
        %v1309 = vadd.f32 %v1054, %v1308
        %v1310 = vpop.f32.mrb[0].mxu0
        %v1311 = vadd.f32 %v1056, %v1310
        %1312 = vmatprep.mubr.bf16.mxu0 0
        %1313 = vmatmul.mubr.bf16.gmra.mrb[0].mxu0 %v1129
        %v1314 = vpop.f32.mrb[0].mxu0
        %v1315 = vadd.f32 %v1060, %v1314
        %v1316 = vpop.f32.mrb[0].mxu0
        %v1317 = vadd.f32 %v1062, %v1316
        %v1318 = vpop.f32.mrb[0].mxu0
        %v1319 = vadd.f32 %v1064, %v1318
        %v1320 = vpop.f32.mrb[0].mxu0
        %v1321 = vadd.f32 %v1066, %v1320
        %1322 = vmatprep.mubr.bf16.mxu0 0
        %1323 = vmatmul.mubr.bf16.gmra.mrb[0].mxu0 %v1132
        %v1324 = vpop.f32.mrb[0].mxu0
        %v1325 = vadd.f32 %v1070, %v1324
        %v1326 = vpop.f32.mrb[0].mxu0
        %v1327 = vadd.f32 %v1072, %v1326
        %v1328 = vpop.f32.mrb[0].mxu0
        %v1329 = vadd.f32 %v1074, %v1328
        %v1330 = vpop.f32.mrb[0].mxu0
        %v1331 = vadd.f32 %v1076, %v1330
        %1332 = vdwg.mxu0
        %s1333 = scalar_lea.vmem [#allocation2], 16
        %v1334 = vld [vmem:[%s1333] sm:$0xff]
        %v1335 = vld [vmem:[%s1333 + $0x8] sm:$0xff]
        %v1336 = vld [vmem:[%s1333 + $0x10] sm:$0xff]
        %v1337 = vld [vmem:[%s1333 + $0x18] sm:$0xff]
        %v1338 = vld [vmem:[%s1333 + $0x20] sm:$0xff]
        %v1339 = vld [vmem:[%s1333 + $0x28] sm:$0xff]
        %v1340 = vld [vmem:[%s1333 + $0x30] sm:$0xff]
        %v1341 = vld [vmem:[%s1333 + $0x38] sm:$0xff]
        %v1342 = vld [vmem:[%s1333 + $0x40] sm:$0xff]
        %v1343 = vld [vmem:[%s1333 + $0x48] sm:$0xff]
        %v1344 = vld [vmem:[%s1333 + $0x50] sm:$0xff]
        %v1345 = vld [vmem:[%s1333 + $0x58] sm:$0xff]
        %v1346 = vld [vmem:[%s1333 + $0x60] sm:$0xff]
        %v1347 = vld [vmem:[%s1333 + $0x68] sm:$0xff]
        %v1348 = vld [vmem:[%s1333 + $0x70] sm:$0xff]
        %v1349 = vld [vmem:[%s1333 + $0x78] sm:$0xff]
        %s1350 = scalar_lea.vmem %s1, 32
        %v1351 = vld [vmem:[%s1350] sm:$0xff]
        %v1352 = vld [vmem:[%s1350 + $0x8] sm:$0x33]
        %v1355 = vunpack.c.l.b16 %v1351
        %v1356 = vunpack.c.h.b16 %v1351
        %v1357 = vunpack.c.l.b16 %v1352
        %v1358 = vunpack.c.h.b16 %v1352
        %v1359 = vpack.c.b16 %v1357, %v1355
        %v1360 = vpack.c.b16 %v1358, %v1356
        %v1362 = vsel %vm310, %v1334, 0
        %v1365 = vsel %vm310, %v1335, 0
        %v1368 = vsel %vm310, %v1336, 0
        %v1371 = vsel %vm310, %v1337, 0
        %v1374 = vsel %vm310, %v1338, 0
        %v1377 = vsel %vm310, %v1339, 0
        %v1380 = vsel %vm310, %v1340, 0
        %v1383 = vsel %vm310, %v1341, 0
        %v1386 = vsel %vm310, %v1342, 0
        %v1389 = vsel %vm310, %v1343, 0
        %v1392 = vsel %vm310, %v1344, 0
        %v1395 = vsel %vm310, %v1345, 0
        %v1398 = vsel %vm310, %v1346, 0
        %v1401 = vsel %vm310, %v1347, 0
        %v1404 = vsel %vm310, %v1348, 0
        %v1407 = vsel %vm310, %v1349, 0
        %v1410 = vsel %vm878, %v1359, 0
        %v1413 = vsel %vm878, %v1360, 0
        %1415 = vmatprep.subr.bf16.mxu0 %v1413
        %1416 = vmatpush1.bf16.msra.mxu0 %v1410
        %1417 = vmatprep.subr.bf16.mxu0 0
        %1418 = vmatpush1.bf16.msra.mxu0 0
        %1419 = vmatprep.subr.bf16.mxu0 0
        %1420 = vmatpush1.bf16.msra.mxu0 0
        %1421 = vmatprep.subr.bf16.mxu0 0
        %1422 = vmatpush1.bf16.msra.mxu0 0
        %1423 = vmatprep.subr.bf16.mxu0 0
        %1424 = vmatpush1.bf16.msra.mxu0 0
        %1425 = vmatprep.subr.bf16.mxu0 0
        %1426 = vmatpush1.bf16.msra.mxu0 0
        %1427 = vmatprep.subr.bf16.mxu0 0
        %1428 = vmatpush1.bf16.msra.mxu0 0
        %1429 = vmatprep.subr.bf16.mxu0 0
        %1430 = vmatpush1.bf16.msra.mxu0 0
        %1431 = vmatprep.subr.bf16.mxu0 0
        %1432 = vmatpush1.bf16.msra.mxu0 0
        %1433 = vmatprep.subr.bf16.mxu0 0
        %1434 = vmatpush1.bf16.msra.mxu0 0
        %1435 = vmatprep.subr.bf16.mxu0 0
        %1436 = vmatpush1.bf16.msra.mxu0 0
        %1437 = vmatprep.subr.bf16.mxu0 0
        %1438 = vmatpush1.bf16.msra.mxu0 0
        %1439 = vmatprep.subr.bf16.mxu0 0
        %1440 = vmatpush1.bf16.msra.mxu0 0
        %1441 = vmatprep.subr.bf16.mxu0 0
        %1442 = vmatpush1.bf16.msra.mxu0 0
        %1443 = vmatprep.subr.bf16.mxu0 0
        %1444 = vmatpush1.bf16.msra.mxu0 0
        %1445 = vmatprep.subr.bf16.mxu0 0
        %1446 = vmatpush1.bf16.msra.mxu0 0
        %1447 = vmatprep.mubr.bf16.mxu0 0
        %1448 = vmatmul.mubr.bf16.gmra.mrb[0].mxu0 %v1362
        %v1449 = vpop.f32.mrb[0].mxu0
        %v1450 = vadd.f32 0.0, %v1449
        %v1451 = vpop.f32.mrb[0].mxu0
        %v1452 = vadd.f32 0.0, %v1451
        %v1453 = vpop.f32.mrb[0].mxu0
        %v1454 = vadd.f32 0.0, %v1453
        %v1455 = vpop.f32.mrb[0].mxu0
        %v1456 = vadd.f32 0.0, %v1455
        %1457 = vmatprep.mubr.bf16.mxu0 0
        %1458 = vmatmul.mubr.bf16.gmra.mrb[0].mxu0 %v1365
        %v1459 = vpop.f32.mrb[0].mxu0
        %v1460 = vadd.f32 0.0, %v1459
        %v1461 = vpop.f32.mrb[0].mxu0
        %v1462 = vadd.f32 0.0, %v1461
        %v1463 = vpop.f32.mrb[0].mxu0
        %v1464 = vadd.f32 0.0, %v1463
        %v1465 = vpop.f32.mrb[0].mxu0
        %v1466 = vadd.f32 0.0, %v1465
        %1467 = vmatprep.mubr.bf16.mxu0 0
        %1468 = vmatmul.mubr.bf16.gmra.mrb[0].mxu0 %v1368
        %v1469 = vpop.f32.mrb[0].mxu0
        %v1470 = vadd.f32 0.0, %v1469
        %v1471 = vpop.f32.mrb[0].mxu0
        %v1472 = vadd.f32 0.0, %v1471
        %v1473 = vpop.f32.mrb[0].mxu0
        %v1474 = vadd.f32 0.0, %v1473
        %v1475 = vpop.f32.mrb[0].mxu0
        %v1476 = vadd.f32 0.0, %v1475
        %1477 = vmatprep.mubr.bf16.mxu0 0
        %1478 = vmatmul.mubr.bf16.gmra.mrb[0].mxu0 %v1371
        %v1479 = vpop.f32.mrb[0].mxu0
        %v1480 = vadd.f32 0.0, %v1479
        %v1481 = vpop.f32.mrb[0].mxu0
        %v1482 = vadd.f32 0.0, %v1481
        %v1483 = vpop.f32.mrb[0].mxu0
        %v1484 = vadd.f32 0.0, %v1483
        %v1485 = vpop.f32.mrb[0].mxu0
        %v1486 = vadd.f32 0.0, %v1485
        %1487 = vmatprep.mubr.bf16.mxu0 0
        %1488 = vmatmul.mubr.bf16.gmra.mrb[0].mxu0 %v1374
        %v1489 = vpop.f32.mrb[0].mxu0
        %v1490 = vadd.f32 0.0, %v1489
        %v1491 = vpop.f32.mrb[0].mxu0
        %v1492 = vadd.f32 0.0, %v1491
        %v1493 = vpop.f32.mrb[0].mxu0
        %v1494 = vadd.f32 0.0, %v1493
        %v1495 = vpop.f32.mrb[0].mxu0
        %v1496 = vadd.f32 0.0, %v1495
        %1497 = vmatprep.mubr.bf16.mxu0 0
        %1498 = vmatmul.mubr.bf16.gmra.mrb[0].mxu0 %v1377
        %v1499 = vpop.f32.mrb[0].mxu0
        %v1500 = vadd.f32 0.0, %v1499
        %v1501 = vpop.f32.mrb[0].mxu0
        %v1502 = vadd.f32 0.0, %v1501
        %v1503 = vpop.f32.mrb[0].mxu0
        %v1504 = vadd.f32 0.0, %v1503
        %v1505 = vpop.f32.mrb[0].mxu0
        %v1506 = vadd.f32 0.0, %v1505
        %1507 = vmatprep.mubr.bf16.mxu0 0
        %1508 = vmatmul.mubr.bf16.gmra.mrb[0].mxu0 %v1380
        %v1509 = vpop.f32.mrb[0].mxu0
        %v1510 = vadd.f32 0.0, %v1509
        %v1511 = vpop.f32.mrb[0].mxu0
        %v1512 = vadd.f32 0.0, %v1511
        %v1513 = vpop.f32.mrb[0].mxu0
        %v1514 = vadd.f32 0.0, %v1513
        %v1515 = vpop.f32.mrb[0].mxu0
        %v1516 = vadd.f32 0.0, %v1515
        %1517 = vmatprep.mubr.bf16.mxu0 0
        %1518 = vmatmul.mubr.bf16.gmra.mrb[0].mxu0 %v1383
        %v1519 = vpop.f32.mrb[0].mxu0
        %v1520 = vadd.f32 0.0, %v1519
        %v1521 = vpop.f32.mrb[0].mxu0
        %v1522 = vadd.f32 0.0, %v1521
        %v1523 = vpop.f32.mrb[0].mxu0
        %v1524 = vadd.f32 0.0, %v1523
        %v1525 = vpop.f32.mrb[0].mxu0
        %v1526 = vadd.f32 0.0, %v1525
        %1527 = vmatprep.mubr.bf16.mxu0 0
        %1528 = vmatmul.mubr.bf16.gmra.mrb[0].mxu0 %v1386
        %v1529 = vpop.f32.mrb[0].mxu0
        %v1530 = vadd.f32 0.0, %v1529
        %v1531 = vpop.f32.mrb[0].mxu0
        %v1532 = vadd.f32 0.0, %v1531
        %v1533 = vpop.f32.mrb[0].mxu0
        %v1534 = vadd.f32 0.0, %v1533
        %v1535 = vpop.f32.mrb[0].mxu0
        %v1536 = vadd.f32 0.0, %v1535
        %1537 = vmatprep.mubr.bf16.mxu0 0
        %1538 = vmatmul.mubr.bf16.gmra.mrb[0].mxu0 %v1389
        %v1539 = vpop.f32.mrb[0].mxu0
        %v1540 = vadd.f32 0.0, %v1539
        %v1541 = vpop.f32.mrb[0].mxu0
        %v1542 = vadd.f32 0.0, %v1541
        %v1543 = vpop.f32.mrb[0].mxu0
        %v1544 = vadd.f32 0.0, %v1543
        %v1545 = vpop.f32.mrb[0].mxu0
        %v1546 = vadd.f32 0.0, %v1545
        %1547 = vmatprep.mubr.bf16.mxu0 0
        %1548 = vmatmul.mubr.bf16.gmra.mrb[0].mxu0 %v1392
        %v1549 = vpop.f32.mrb[0].mxu0
        %v1550 = vadd.f32 0.0, %v1549
        %v1551 = vpop.f32.mrb[0].mxu0
        %v1552 = vadd.f32 0.0, %v1551
        %v1553 = vpop.f32.mrb[0].mxu0
        %v1554 = vadd.f32 0.0, %v1553
        %v1555 = vpop.f32.mrb[0].mxu0
        %v1556 = vadd.f32 0.0, %v1555
        %1557 = vmatprep.mubr.bf16.mxu0 0
        %1558 = vmatmul.mubr.bf16.gmra.mrb[0].mxu0 %v1395
        %v1559 = vpop.f32.mrb[0].mxu0
        %v1560 = vadd.f32 0.0, %v1559
        %v1561 = vpop.f32.mrb[0].mxu0
        %v1562 = vadd.f32 0.0, %v1561
        %v1563 = vpop.f32.mrb[0].mxu0
        %v1564 = vadd.f32 0.0, %v1563
        %v1565 = vpop.f32.mrb[0].mxu0
        %v1566 = vadd.f32 0.0, %v1565
        %1567 = vmatprep.mubr.bf16.mxu0 0
        %1568 = vmatmul.mubr.bf16.gmra.mrb[0].mxu0 %v1398
        %v1569 = vpop.f32.mrb[0].mxu0
        %v1570 = vadd.f32 0.0, %v1569
        %v1571 = vpop.f32.mrb[0].mxu0
        %v1572 = vadd.f32 0.0, %v1571
        %v1573 = vpop.f32.mrb[0].mxu0
        %v1574 = vadd.f32 0.0, %v1573
        %v1575 = vpop.f32.mrb[0].mxu0
        %v1576 = vadd.f32 0.0, %v1575
        %1577 = vmatprep.mubr.bf16.mxu0 0
        %1578 = vmatmul.mubr.bf16.gmra.mrb[0].mxu0 %v1401
        %v1579 = vpop.f32.mrb[0].mxu0
        %v1580 = vadd.f32 0.0, %v1579
        %v1581 = vpop.f32.mrb[0].mxu0
        %v1582 = vadd.f32 0.0, %v1581
        %v1583 = vpop.f32.mrb[0].mxu0
        %v1584 = vadd.f32 0.0, %v1583
        %v1585 = vpop.f32.mrb[0].mxu0
        %v1586 = vadd.f32 0.0, %v1585
        %1587 = vmatprep.mubr.bf16.mxu0 0
        %1588 = vmatmul.mubr.bf16.gmra.mrb[0].mxu0 %v1404
        %v1589 = vpop.f32.mrb[0].mxu0
        %v1590 = vadd.f32 0.0, %v1589
        %v1591 = vpop.f32.mrb[0].mxu0
        %v1592 = vadd.f32 0.0, %v1591
        %v1593 = vpop.f32.mrb[0].mxu0
        %v1594 = vadd.f32 0.0, %v1593
        %v1595 = vpop.f32.mrb[0].mxu0
        %v1596 = vadd.f32 0.0, %v1595
        %1597 = vmatprep.mubr.bf16.mxu0 0
        %1598 = vmatmul.mubr.bf16.gmra.mrb[0].mxu0 %v1407
        %v1599 = vpop.f32.mrb[0].mxu0
        %v1600 = vadd.f32 0.0, %v1599
        %v1601 = vpop.f32.mrb[0].mxu0
        %v1602 = vadd.f32 0.0, %v1601
        %v1603 = vpop.f32.mrb[0].mxu0
        %v1604 = vadd.f32 0.0, %v1603
        %v1605 = vpop.f32.mrb[0].mxu0
        %v1606 = vadd.f32 0.0, %v1605
        %1607 = vdwg.mxu0
        %v1608 = vadd.f32 %v1175, %v1450
        %v1609 = vadd.f32 %v1177, %v1452
        %v1610 = vadd.f32 %v1179, %v1454
        %v1611 = vadd.f32 %v1181, %v1456
        %v1612 = vadd.f32 %v1185, %v1460
        %v1613 = vadd.f32 %v1187, %v1462
        %v1614 = vadd.f32 %v1189, %v1464
        %v1615 = vadd.f32 %v1191, %v1466
        %v1616 = vadd.f32 %v1195, %v1470
        %v1617 = vadd.f32 %v1197, %v1472
        %v1618 = vadd.f32 %v1199, %v1474
        %v1619 = vadd.f32 %v1201, %v1476
        %v1620 = vadd.f32 %v1205, %v1480
        %v1621 = vadd.f32 %v1207, %v1482
        %v1622 = vadd.f32 %v1209, %v1484
        %v1623 = vadd.f32 %v1211, %v1486
        %v1624 = vadd.f32 %v1215, %v1490
        %v1625 = vadd.f32 %v1217, %v1492
        %v1626 = vadd.f32 %v1219, %v1494
        %v1627 = vadd.f32 %v1221, %v1496
        %v1628 = vadd.f32 %v1225, %v1500
        %v1629 = vadd.f32 %v1227, %v1502
        %v1630 = vadd.f32 %v1229, %v1504
        %v1631 = vadd.f32 %v1231, %v1506
        %v1632 = vadd.f32 %v1235, %v1510
        %v1633 = vadd.f32 %v1237, %v1512
        %v1634 = vadd.f32 %v1239, %v1514
        %v1635 = vadd.f32 %v1241, %v1516
        %v1636 = vadd.f32 %v1245, %v1520
        %v1637 = vadd.f32 %v1247, %v1522
        %v1638 = vadd.f32 %v1249, %v1524
        %v1639 = vadd.f32 %v1251, %v1526
        %v1640 = vadd.f32 %v1255, %v1530
        %v1641 = vadd.f32 %v1257, %v1532
        %v1642 = vadd.f32 %v1259, %v1534
        %v1643 = vadd.f32 %v1261, %v1536
        %v1644 = vadd.f32 %v1265, %v1540
        %v1645 = vadd.f32 %v1267, %v1542
        %v1646 = vadd.f32 %v1269, %v1544
        %v1647 = vadd.f32 %v1271, %v1546
        %v1648 = vadd.f32 %v1275, %v1550
        %v1649 = vadd.f32 %v1277, %v1552
        %v1650 = vadd.f32 %v1279, %v1554
        %v1651 = vadd.f32 %v1281, %v1556
        %v1652 = vadd.f32 %v1285, %v1560
        %v1653 = vadd.f32 %v1287, %v1562
        %v1654 = vadd.f32 %v1289, %v1564
        %v1655 = vadd.f32 %v1291, %v1566
        %v1656 = vadd.f32 %v1295, %v1570
        %v1657 = vadd.f32 %v1297, %v1572
        %v1658 = vadd.f32 %v1299, %v1574
        %v1659 = vadd.f32 %v1301, %v1576
        %v1660 = vadd.f32 %v1305, %v1580
        %v1661 = vadd.f32 %v1307, %v1582
        %v1662 = vadd.f32 %v1309, %v1584
        %v1663 = vadd.f32 %v1311, %v1586
        %v1664 = vadd.f32 %v1315, %v1590
        %v1665 = vadd.f32 %v1317, %v1592
        %v1666 = vadd.f32 %v1319, %v1594
        %v1667 = vadd.f32 %v1321, %v1596
        %v1668 = vadd.f32 %v1325, %v1600
        %v1669 = vadd.f32 %v1327, %v1602
        %v1670 = vadd.f32 %v1329, %v1604
        %v1671 = vadd.f32 %v1331, %v1606
        %v1672 = vld [vmem:[%s2] sm:$0x3]
        %v1674 = vlaneseq
        %v1675 = vshrl.u32 %v1674, 7
        %v1676 = vsub.s32 0, %v1675
        %v1677 = vrot.slane %v1672, %v1676
        %v1678 = vlaneseq
        %v1679 = vshrl.u32 %v1678, 7
        %v1680 = vsub.s32 1, %v1679
        %v1681 = vrot.slane %v1672, %v1680
        %v1684 = vadd.f32 %v1608, %v1677
        %v1685 = vadd.f32 %v1609, %v1681
        %v1686 = vadd.f32 %v1610, %v1677
        %v1687 = vadd.f32 %v1611, %v1681
        %v1688 = vadd.f32 %v1612, %v1677
        %v1689 = vadd.f32 %v1613, %v1681
        %v1690 = vadd.f32 %v1614, %v1677
        %v1691 = vadd.f32 %v1615, %v1681
        %v1692 = vadd.f32 %v1616, %v1677
        %v1693 = vadd.f32 %v1617, %v1681
        %v1694 = vadd.f32 %v1618, %v1677
        %v1695 = vadd.f32 %v1619, %v1681
        %v1696 = vadd.f32 %v1620, %v1677
        %v1697 = vadd.f32 %v1621, %v1681
        %v1698 = vadd.f32 %v1622, %v1677
        %v1699 = vadd.f32 %v1623, %v1681
        %v1700 = vadd.f32 %v1624, %v1677
        %v1701 = vadd.f32 %v1625, %v1681
        %v1702 = vadd.f32 %v1626, %v1677
        %v1703 = vadd.f32 %v1627, %v1681
        %v1704 = vadd.f32 %v1628, %v1677
        %v1705 = vadd.f32 %v1629, %v1681
        %v1706 = vadd.f32 %v1630, %v1677
        %v1707 = vadd.f32 %v1631, %v1681
        %v1708 = vadd.f32 %v1632, %v1677
        %v1709 = vadd.f32 %v1633, %v1681
        %v1710 = vadd.f32 %v1634, %v1677
        %v1711 = vadd.f32 %v1635, %v1681
        %v1712 = vadd.f32 %v1636, %v1677
        %v1713 = vadd.f32 %v1637, %v1681
        %v1714 = vadd.f32 %v1638, %v1677
        %v1715 = vadd.f32 %v1639, %v1681
        %v1716 = vadd.f32 %v1640, %v1677
        %v1717 = vadd.f32 %v1641, %v1681
        %v1718 = vadd.f32 %v1642, %v1677
        %v1719 = vadd.f32 %v1643, %v1681
        %v1720 = vadd.f32 %v1644, %v1677
        %v1721 = vadd.f32 %v1645, %v1681
        %v1722 = vadd.f32 %v1646, %v1677
        %v1723 = vadd.f32 %v1647, %v1681
        %v1724 = vadd.f32 %v1648, %v1677
        %v1725 = vadd.f32 %v1649, %v1681
        %v1726 = vadd.f32 %v1650, %v1677
        %v1727 = vadd.f32 %v1651, %v1681
        %v1728 = vadd.f32 %v1652, %v1677
        %v1729 = vadd.f32 %v1653, %v1681
        %v1730 = vadd.f32 %v1654, %v1677
        %v1731 = vadd.f32 %v1655, %v1681
        %v1732 = vadd.f32 %v1656, %v1677
        %v1733 = vadd.f32 %v1657, %v1681
        %v1734 = vadd.f32 %v1658, %v1677
        %v1735 = vadd.f32 %v1659, %v1681
        %v1736 = vadd.f32 %v1660, %v1677
        %v1737 = vadd.f32 %v1661, %v1681
        %v1738 = vadd.f32 %v1662, %v1677
        %v1739 = vadd.f32 %v1663, %v1681
        %v1740 = vadd.f32 %v1664, %v1677
        %v1741 = vadd.f32 %v1665, %v1681
        %v1742 = vadd.f32 %v1666, %v1677
        %v1743 = vadd.f32 %v1667, %v1681
        %v1744 = vadd.f32 %v1668, %v1677
        %v1745 = vadd.f32 %v1669, %v1681
        %v1746 = vadd.f32 %v1670, %v1677
        %v1747 = vadd.f32 %v1671, %v1681
        %v1748 = vmax.f32 %v1684, 0.0
        %v1749 = vmax.f32 %v1685, 0.0
        %v1750 = vmax.f32 %v1686, 0.0
        %v1751 = vmax.f32 %v1687, 0.0
        %v1752 = vmax.f32 %v1688, 0.0
        %v1753 = vmax.f32 %v1689, 0.0
        %v1754 = vmax.f32 %v1690, 0.0
        %v1755 = vmax.f32 %v1691, 0.0
        %v1756 = vmax.f32 %v1692, 0.0
        %v1757 = vmax.f32 %v1693, 0.0
        %v1758 = vmax.f32 %v1694, 0.0
        %v1759 = vmax.f32 %v1695, 0.0
        %v1760 = vmax.f32 %v1696, 0.0
        %v1761 = vmax.f32 %v1697, 0.0
        %v1762 = vmax.f32 %v1698, 0.0
        %v1763 = vmax.f32 %v1699, 0.0
        %v1764 = vmax.f32 %v1700, 0.0
        %v1765 = vmax.f32 %v1701, 0.0
        %v1766 = vmax.f32 %v1702, 0.0
        %v1767 = vmax.f32 %v1703, 0.0
        %v1768 = vmax.f32 %v1704, 0.0
        %v1769 = vmax.f32 %v1705, 0.0
        %v1770 = vmax.f32 %v1706, 0.0
        %v1771 = vmax.f32 %v1707, 0.0
        %v1772 = vmax.f32 %v1708, 0.0
        %v1773 = vmax.f32 %v1709, 0.0
        %v1774 = vmax.f32 %v1710, 0.0
        %v1775 = vmax.f32 %v1711, 0.0
        %v1776 = vmax.f32 %v1712, 0.0
        %v1777 = vmax.f32 %v1713, 0.0
        %v1778 = vmax.f32 %v1714, 0.0
        %v1779 = vmax.f32 %v1715, 0.0
        %v1780 = vmax.f32 %v1716, 0.0
        %v1781 = vmax.f32 %v1717, 0.0
        %v1782 = vmax.f32 %v1718, 0.0
        %v1783 = vmax.f32 %v1719, 0.0
        %v1784 = vmax.f32 %v1720, 0.0
        %v1785 = vmax.f32 %v1721, 0.0
        %v1786 = vmax.f32 %v1722, 0.0
        %v1787 = vmax.f32 %v1723, 0.0
        %v1788 = vmax.f32 %v1724, 0.0
        %v1789 = vmax.f32 %v1725, 0.0
        %v1790 = vmax.f32 %v1726, 0.0
        %v1791 = vmax.f32 %v1727, 0.0
        %v1792 = vmax.f32 %v1728, 0.0
        %v1793 = vmax.f32 %v1729, 0.0
        %v1794 = vmax.f32 %v1730, 0.0
        %v1795 = vmax.f32 %v1731, 0.0
        %v1796 = vmax.f32 %v1732, 0.0
        %v1797 = vmax.f32 %v1733, 0.0
        %v1798 = vmax.f32 %v1734, 0.0
        %v1799 = vmax.f32 %v1735, 0.0
        %v1800 = vmax.f32 %v1736, 0.0
        %v1801 = vmax.f32 %v1737, 0.0
        %v1802 = vmax.f32 %v1738, 0.0
        %v1803 = vmax.f32 %v1739, 0.0
        %v1804 = vmax.f32 %v1740, 0.0
        %v1805 = vmax.f32 %v1741, 0.0
        %v1806 = vmax.f32 %v1742, 0.0
        %v1807 = vmax.f32 %v1743, 0.0
        %v1808 = vmax.f32 %v1744, 0.0
        %v1809 = vmax.f32 %v1745, 0.0
        %v1810 = vmax.f32 %v1746, 0.0
        %v1811 = vmax.f32 %v1747, 0.0
        %v1812 = vadd.f32 %v1748, %v1750
        %v1813 = vadd.f32 %v1812, %v1752
        %v1814 = vadd.f32 %v1813, %v1754
        %v1815 = vadd.f32 %v1814, %v1756
        %v1816 = vadd.f32 %v1815, %v1758
        %v1817 = vadd.f32 %v1816, %v1760
        %v1818 = vadd.f32 %v1817, %v1762
        %v1819 = vadd.f32 %v1818, %v1764
        %v1820 = vadd.f32 %v1819, %v1766
        %v1821 = vadd.f32 %v1820, %v1768
        %v1822 = vadd.f32 %v1821, %v1770
        %v1823 = vadd.f32 %v1822, %v1772
        %v1824 = vadd.f32 %v1823, %v1774
        %v1825 = vadd.f32 %v1824, %v1776
        %v1826 = vadd.f32 %v1825, %v1778
        %v1827 = vadd.f32 %v1826, %v1780
        %v1828 = vadd.f32 %v1827, %v1782
        %v1829 = vadd.f32 %v1828, %v1784
        %v1830 = vadd.f32 %v1829, %v1786
        %v1831 = vadd.f32 %v1830, %v1788
        %v1832 = vadd.f32 %v1831, %v1790
        %v1833 = vadd.f32 %v1832, %v1792
        %v1834 = vadd.f32 %v1833, %v1794
        %v1835 = vadd.f32 %v1834, %v1796
        %v1836 = vadd.f32 %v1835, %v1798
        %v1837 = vadd.f32 %v1836, %v1800
        %v1838 = vadd.f32 %v1837, %v1802
        %v1839 = vadd.f32 %v1838, %v1804
        %v1840 = vadd.f32 %v1839, %v1806
        %v1841 = vadd.f32 %v1840, %v1808
        %v1842 = vadd.f32 %v1841, %v1810
        %v1843 = vrot.slane %v1842, 4
        %v1844 = vadd.f32 %v1842, %v1843
        %v1845 = vrot.slane %v1844, 2
        %v1846 = vadd.f32 %v1844, %v1845
        %v1847 = vrot.slane %v1846, 1
        %v1848 = vadd.f32 %v1846, %v1847
        %v1849 = vadd.f32 %v1749, %v1751
        %v1850 = vadd.f32 %v1849, %v1753
        %v1851 = vadd.f32 %v1850, %v1755
        %v1852 = vadd.f32 %v1851, %v1757
        %v1853 = vadd.f32 %v1852, %v1759
        %v1854 = vadd.f32 %v1853, %v1761
        %v1855 = vadd.f32 %v1854, %v1763
        %v1856 = vadd.f32 %v1855, %v1765
        %v1857 = vadd.f32 %v1856, %v1767
        %v1858 = vadd.f32 %v1857, %v1769
        %v1859 = vadd.f32 %v1858, %v1771
        %v1860 = vadd.f32 %v1859, %v1773
        %v1861 = vadd.f32 %v1860, %v1775
        %v1862 = vadd.f32 %v1861, %v1777
        %v1863 = vadd.f32 %v1862, %v1779
        %v1864 = vadd.f32 %v1863, %v1781
        %v1865 = vadd.f32 %v1864, %v1783
        %v1866 = vadd.f32 %v1865, %v1785
        %v1867 = vadd.f32 %v1866, %v1787
        %v1868 = vadd.f32 %v1867, %v1789
        %v1869 = vadd.f32 %v1868, %v1791
        %v1870 = vadd.f32 %v1869, %v1793
        %v1871 = vadd.f32 %v1870, %v1795
        %v1872 = vadd.f32 %v1871, %v1797
        %v1873 = vadd.f32 %v1872, %v1799
        %v1874 = vadd.f32 %v1873, %v1801
        %v1875 = vadd.f32 %v1874, %v1803
        %v1876 = vadd.f32 %v1875, %v1805
        %v1877 = vadd.f32 %v1876, %v1807
        %v1878 = vadd.f32 %v1877, %v1809
        %v1879 = vadd.f32 %v1878, %v1811
        %v1880 = vrot.slane %v1879, 4
        %v1881 = vadd.f32 %v1879, %v1880
        %v1882 = vrot.slane %v1881, 2
        %v1883 = vadd.f32 %v1881, %v1882
        %v1884 = vrot.slane %v1883, 1
        %v1885 = vadd.f32 %v1883, %v1884
        %v1886 = vadd.f32 %v1848, %v1885
        %v1887 = vmul.f32 %v1886, 0.00390625
        %v1888 = vpack.c.bf16 %v1887, %v1887
        %v1889 = vld [vmem:[%s3] sm:$0xf]
        %v1890 = vld [vmem:[%s3 + $0x4] sm:$0xf]
        %v1891 = vld [vmem:[%s3 + $0x8] sm:$0xf]
        %v1892 = vld [vmem:[%s3 + $0xc] sm:$0xf]
        %v1893 = vld [vmem:[%s3 + $0x10] sm:$0xf]
        %v1894 = vld [vmem:[%s3 + $0x14] sm:$0xf]
        %v1895 = vld [vmem:[%s3 + $0x18] sm:$0xf]
        %v1896 = vld [vmem:[%s3 + $0x1c] sm:$0xf]
        %v1897 = vld [vmem:[%s3 + $0x20] sm:$0xf]
        %v1898 = vld [vmem:[%s3 + $0x24] sm:$0xf]
        %v1899 = vld [vmem:[%s3 + $0x28] sm:$0xf]
        %v1900 = vld [vmem:[%s3 + $0x2c] sm:$0xf]
        %v1901 = vld [vmem:[%s3 + $0x30] sm:$0xf]
        %v1902 = vld [vmem:[%s3 + $0x34] sm:$0xf]
        %v1903 = vld [vmem:[%s3 + $0x38] sm:$0xf]
        %v1904 = vld [vmem:[%s3 + $0x3c] sm:$0xf]
        %v1905 = vld [vmem:[%s4] sm:$0x1]
        %v1922 = vunpack.c.l.b16 %v1889
        %v1923 = vunpack.c.l.b16 %v1890
        %v1924 = vunpack.c.l.b16 %v1891
        %v1925 = vunpack.c.l.b16 %v1892
        %v1926 = vunpack.c.l.b16 %v1893
        %v1927 = vunpack.c.l.b16 %v1894
        %v1928 = vunpack.c.l.b16 %v1895
        %v1929 = vunpack.c.l.b16 %v1896
        %v1930 = vunpack.c.l.b16 %v1897
        %v1931 = vunpack.c.l.b16 %v1898
        %v1932 = vunpack.c.l.b16 %v1899
        %v1933 = vunpack.c.l.b16 %v1900
        %v1934 = vunpack.c.l.b16 %v1901
        %v1935 = vunpack.c.l.b16 %v1902
        %v1936 = vunpack.c.l.b16 %v1903
        %v1937 = vunpack.c.l.b16 %v1904
        %v1938 = vpack.c.b16 %v1923, %v1922
        %v1939 = vpack.c.b16 %v1925, %v1924
        %v1940 = vpack.c.b16 %v1927, %v1926
        %v1941 = vpack.c.b16 %v1929, %v1928
        %v1942 = vpack.c.b16 %v1931, %v1930
        %v1943 = vpack.c.b16 %v1933, %v1932
        %v1944 = vpack.c.b16 %v1935, %v1934
        %v1945 = vpack.c.b16 %v1937, %v1936
        %1954 = vmatprep.subr.bf16.mxu0 0
        %1955 = vmatpush1.bf16.msra.mxu0 %v1938
        %1956 = vmatprep.subr.bf16.mxu0 0
        %1957 = vmatpush1.bf16.msra.mxu0 %v1939
        %1958 = vmatprep.subr.bf16.mxu0 0
        %1959 = vmatpush1.bf16.msra.mxu0 %v1940
        %1960 = vmatprep.subr.bf16.mxu0 0
        %1961 = vmatpush1.bf16.msra.mxu0 %v1941
        %1962 = vmatprep.subr.bf16.mxu0 0
        %1963 = vmatpush1.bf16.msra.mxu0 %v1942
        %1964 = vmatprep.subr.bf16.mxu0 0
        %1965 = vmatpush1.bf16.msra.mxu0 %v1943
        %1966 = vmatprep.subr.bf16.mxu0 0
        %1967 = vmatpush1.bf16.msra.mxu0 %v1944
        %1968 = vmatprep.subr.bf16.mxu0 0
        %1969 = vmatpush1.bf16.msra.mxu0 %v1945
        %1970 = vmatprep.subr.bf16.mxu0 0
        %1971 = vmatpush1.bf16.msra.mxu0 0
        %1972 = vmatprep.subr.bf16.mxu0 0
        %1973 = vmatpush1.bf16.msra.mxu0 0
        %1974 = vmatprep.subr.bf16.mxu0 0
        %1975 = vmatpush1.bf16.msra.mxu0 0
        %1976 = vmatprep.subr.bf16.mxu0 0
        %1977 = vmatpush1.bf16.msra.mxu0 0
        %1978 = vmatprep.subr.bf16.mxu0 0
        %1979 = vmatpush1.bf16.msra.mxu0 0
        %1980 = vmatprep.subr.bf16.mxu0 0
        %1981 = vmatpush1.bf16.msra.mxu0 0
        %1982 = vmatprep.subr.bf16.mxu0 0
        %1983 = vmatpush1.bf16.msra.mxu0 0
        %1984 = vmatprep.subr.bf16.mxu0 0
        %1985 = vmatpush1.bf16.msra.mxu0 0
        %1986 = vmatprep.mubr.bf16.mxu0 0
        %1987 = vmatmul.mubr.bf16.gmra.mrb[0].mxu0 %v1888
        %v1988 = vpop.f32.mrb[0].mxu0
        %v1989 = vadd.f32 %v1905, %v1988
        %v1990 = vpop.f32.mrb[0].mxu0
        %v1991 = vpop.f32.mrb[0].mxu0
        %v1992 = vpop.f32.mrb[0].mxu0
        %1993 = vdwg.mxu0
        %v1994 = vmax.f32 %v1989, 0.0
        %v1995 = vpack.c.bf16 %v1994, %v1994
        %v1996 = vld [vmem:[%s5] sm:$0xff]
        %v1997 = vld [vmem:[%s5 + $0x8] sm:$0xff]
        %v1998 = vld [vmem:[%s5 + $0x10] sm:$0xff]
        %v1999 = vld [vmem:[%s5 + $0x18] sm:$0xff]
        %v2000 = vld [vmem:[%s6] sm:$0x3]
        %v2005 = vunpack.c.l.b16 %v1996
        %v2006 = vunpack.c.h.b16 %v1996
        %v2007 = vunpack.c.l.b16 %v1997
        %v2008 = vunpack.c.h.b16 %v1997
        %v2009 = vunpack.c.l.b16 %v1998
        %v2010 = vunpack.c.h.b16 %v1998
        %v2011 = vunpack.c.l.b16 %v1999
        %v2012 = vunpack.c.h.b16 %v1999
        %v2013 = vpack.c.b16 %v2007, %v2005
        %v2014 = vpack.c.b16 %v2008, %v2006
        %v2015 = vpack.c.b16 %v2011, %v2009
        %v2016 = vpack.c.b16 %v2012, %v2010
        %v2022 = vlaneseq
        %v2023 = vshrl.u32 %v2022, 7
        %v2024 = vsub.s32 0, %v2023
        %v2025 = vrot.slane %v2000, %v2024
        %v2026 = vlaneseq
        %v2027 = vshrl.u32 %v2026, 7
        %v2028 = vsub.s32 1, %v2027
        %v2029 = vrot.slane %v2000, %v2028
        %vm2032 = vcmask 261120
        %v2034 = vsel %vm2032, %v1995, 0
        %2036 = vmatprep.subr.bf16.mxu0 %v2014
        %2037 = vmatpush1.bf16.msra.mxu0 %v2013
        %2038 = vmatprep.subr.bf16.mxu0 %v2016
        %2039 = vmatpush1.bf16.msra.mxu0 %v2015
        %2040 = vmatprep.subr.bf16.mxu0 0
        %2041 = vmatpush1.bf16.msra.mxu0 0
        %2042 = vmatprep.subr.bf16.mxu0 0
        %2043 = vmatpush1.bf16.msra.mxu0 0
        %2044 = vmatprep.subr.bf16.mxu0 0
        %2045 = vmatpush1.bf16.msra.mxu0 0
        %2046 = vmatprep.subr.bf16.mxu0 0
        %2047 = vmatpush1.bf16.msra.mxu0 0
        %2048 = vmatprep.subr.bf16.mxu0 0
        %2049 = vmatpush1.bf16.msra.mxu0 0
        %2050 = vmatprep.subr.bf16.mxu0 0
        %2051 = vmatpush1.bf16.msra.mxu0 0
        %2052 = vmatprep.subr.bf16.mxu0 0
        %2053 = vmatpush1.bf16.msra.mxu0 0
        %2054 = vmatprep.subr.bf16.mxu0 0
        %2055 = vmatpush1.bf16.msra.mxu0 0
        %2056 = vmatprep.subr.bf16.mxu0 0
        %2057 = vmatpush1.bf16.msra.mxu0 0
        %2058 = vmatprep.subr.bf16.mxu0 0
        %2059 = vmatpush1.bf16.msra.mxu0 0
        %2060 = vmatprep.subr.bf16.mxu0 0
        %2061 = vmatpush1.bf16.msra.mxu0 0
        %2062 = vmatprep.subr.bf16.mxu0 0
        %2063 = vmatpush1.bf16.msra.mxu0 0
        %2064 = vmatprep.subr.bf16.mxu0 0
        %2065 = vmatpush1.bf16.msra.mxu0 0
        %2066 = vmatprep.subr.bf16.mxu0 0
        %2067 = vmatpush1.bf16.msra.mxu0 0
        %2068 = vmatprep.mubr.bf16.mxu0 0
        %2069 = vmatmul.mubr.bf16.gmra.mrb[0].mxu0 %v2034
        %v2070 = vpop.f32.mrb[0].mxu0
        %v2071 = vadd.f32 %v2025, %v2070
        %v2072 = vpop.f32.mrb[0].mxu0
        %v2073 = vadd.f32 %v2029, %v2072
        %v2074 = vpop.f32.mrb[0].mxu0
        %v2075 = vpop.f32.mrb[0].mxu0
        %2076 = vdwg.mxu0
        %v2077 = vmax.f32 %v2071, %v2073
        %v2078 = vsub.f32 %v2071, %v2077
        %v2079 = vmul.f32 %v2078, 1.442695
        %v2080 = vpow.pop %v2079
        %v2081 = vsub.f32 %v2073, %v2077
        %v2082 = vmul.f32 %v2081, 1.442695
        %v2083 = vpow.pop %v2082
        %v2084 = vadd.f32 %v2080, %v2083
        %v2085 = vrcp.pop %v2084
        %v2086 = vmul.f32 %v2080, %v2085
        %v2087 = vmul.f32 %v2083, %v2085
        %v2088 = vlaneseq
        %v2089 = vshrl.u32 %v2088, 7
        %v2090 = vsub.s32 0, %v2089
        %v2091 = vrot.slane %v2086, %v2090
        %v2092 = vmul.f32 %v2091, %v1748
        %v2093 = vmul.f32 %v2091, %v1750
        %v2094 = vmul.f32 %v2091, %v1752
        %v2095 = vmul.f32 %v2091, %v1754
        %v2096 = vmul.f32 %v2091, %v1756
        %v2097 = vmul.f32 %v2091, %v1758
        %v2098 = vmul.f32 %v2091, %v1760
        %v2099 = vmul.f32 %v2091, %v1762
        %v2100 = vmul.f32 %v2091, %v1764
        %v2101 = vmul.f32 %v2091, %v1766
        %v2102 = vmul.f32 %v2091, %v1768
        %v2103 = vmul.f32 %v2091, %v1770
        %v2104 = vmul.f32 %v2091, %v1772
        %v2105 = vmul.f32 %v2091, %v1774
        %v2106 = vmul.f32 %v2091, %v1776
        %v2107 = vmul.f32 %v2091, %v1778
        %v2108 = vmul.f32 %v2091, %v1780
        %v2109 = vmul.f32 %v2091, %v1782
        %v2110 = vmul.f32 %v2091, %v1784
        %v2111 = vmul.f32 %v2091, %v1786
        %v2112 = vmul.f32 %v2091, %v1788
        %v2113 = vmul.f32 %v2091, %v1790
        %v2114 = vmul.f32 %v2091, %v1792
        %v2115 = vmul.f32 %v2091, %v1794
        %v2116 = vmul.f32 %v2091, %v1796
        %v2117 = vmul.f32 %v2091, %v1798
        %v2118 = vmul.f32 %v2091, %v1800
        %v2119 = vmul.f32 %v2091, %v1802
        %v2120 = vmul.f32 %v2091, %v1804
        %v2121 = vmul.f32 %v2091, %v1806
        %v2122 = vmul.f32 %v2091, %v1808
        %v2123 = vmul.f32 %v2091, %v1810
        %v2124 = vlaneseq
        %v2125 = vshrl.u32 %v2124, 7
        %v2126 = vsub.s32 0, %v2125
        %v2127 = vrot.slane %v2087, %v2126
        %v2128 = vmul.f32 %v2127, %v1749
        %v2129 = vmul.f32 %v2127, %v1751
        %v2130 = vmul.f32 %v2127, %v1753
        %v2131 = vmul.f32 %v2127, %v1755
        %v2132 = vmul.f32 %v2127, %v1757
        %v2133 = vmul.f32 %v2127, %v1759
        %v2134 = vmul.f32 %v2127, %v1761
        %v2135 = vmul.f32 %v2127, %v1763
        %v2136 = vmul.f32 %v2127, %v1765
        %v2137 = vmul.f32 %v2127, %v1767
        %v2138 = vmul.f32 %v2127, %v1769
        %v2139 = vmul.f32 %v2127, %v1771
        %v2140 = vmul.f32 %v2127, %v1773
        %v2141 = vmul.f32 %v2127, %v1775
        %v2142 = vmul.f32 %v2127, %v1777
        %v2143 = vmul.f32 %v2127, %v1779
        %v2144 = vmul.f32 %v2127, %v1781
        %v2145 = vmul.f32 %v2127, %v1783
        %v2146 = vmul.f32 %v2127, %v1785
        %v2147 = vmul.f32 %v2127, %v1787
        %v2148 = vmul.f32 %v2127, %v1789
        %v2149 = vmul.f32 %v2127, %v1791
        %v2150 = vmul.f32 %v2127, %v1793
        %v2151 = vmul.f32 %v2127, %v1795
        %v2152 = vmul.f32 %v2127, %v1797
        %v2153 = vmul.f32 %v2127, %v1799
        %v2154 = vmul.f32 %v2127, %v1801
        %v2155 = vmul.f32 %v2127, %v1803
        %v2156 = vmul.f32 %v2127, %v1805
        %v2157 = vmul.f32 %v2127, %v1807
        %v2158 = vmul.f32 %v2127, %v1809
        %v2159 = vmul.f32 %v2127, %v1811
        %v2160 = vadd.f32 %v2092, %v2128
        %v2161 = vadd.f32 %v2093, %v2129
        %v2162 = vadd.f32 %v2094, %v2130
        %v2163 = vadd.f32 %v2095, %v2131
        %v2164 = vadd.f32 %v2096, %v2132
        %v2165 = vadd.f32 %v2097, %v2133
        %v2166 = vadd.f32 %v2098, %v2134
        %v2167 = vadd.f32 %v2099, %v2135
        %v2168 = vadd.f32 %v2100, %v2136
        %v2169 = vadd.f32 %v2101, %v2137
        %v2170 = vadd.f32 %v2102, %v2138
        %v2171 = vadd.f32 %v2103, %v2139
        %v2172 = vadd.f32 %v2104, %v2140
        %v2173 = vadd.f32 %v2105, %v2141
        %v2174 = vadd.f32 %v2106, %v2142
        %v2175 = vadd.f32 %v2107, %v2143
        %v2176 = vadd.f32 %v2108, %v2144
        %v2177 = vadd.f32 %v2109, %v2145
        %v2178 = vadd.f32 %v2110, %v2146
        %v2179 = vadd.f32 %v2111, %v2147
        %v2180 = vadd.f32 %v2112, %v2148
        %v2181 = vadd.f32 %v2113, %v2149
        %v2182 = vadd.f32 %v2114, %v2150
        %v2183 = vadd.f32 %v2115, %v2151
        %v2184 = vadd.f32 %v2116, %v2152
        %v2185 = vadd.f32 %v2117, %v2153
        %v2186 = vadd.f32 %v2118, %v2154
        %v2187 = vadd.f32 %v2119, %v2155
        %v2188 = vadd.f32 %v2120, %v2156
        %v2189 = vadd.f32 %v2121, %v2157
        %v2190 = vadd.f32 %v2122, %v2158
        %v2191 = vadd.f32 %v2123, %v2159
        %v2192 = vpack.c.bf16 %v2161, %v2160
        %v2193 = vpack.c.bf16 %v2163, %v2162
        %v2194 = vpack.c.bf16 %v2165, %v2164
        %v2195 = vpack.c.bf16 %v2167, %v2166
        %v2196 = vpack.c.bf16 %v2169, %v2168
        %v2197 = vpack.c.bf16 %v2171, %v2170
        %v2198 = vpack.c.bf16 %v2173, %v2172
        %v2199 = vpack.c.bf16 %v2175, %v2174
        %v2200 = vpack.c.bf16 %v2177, %v2176
        %v2201 = vpack.c.bf16 %v2179, %v2178
        %v2202 = vpack.c.bf16 %v2181, %v2180
        %v2203 = vpack.c.bf16 %v2183, %v2182
        %v2204 = vpack.c.bf16 %v2185, %v2184
        %v2205 = vpack.c.bf16 %v2187, %v2186
        %v2206 = vpack.c.bf16 %v2189, %v2188
        %v2207 = vpack.c.bf16 %v2191, %v2190
        %v2224 = vunpack.c.l.b16 %v2192
        %v2225 = vunpack.c.h.b16 %v2192
        %v2226 = vunpack.c.l.b16 %v2193
        %v2227 = vunpack.c.h.b16 %v2193
        %v2228 = vunpack.c.l.b16 %v2194
        %v2229 = vunpack.c.h.b16 %v2194
        %v2230 = vunpack.c.l.b16 %v2195
        %v2231 = vunpack.c.h.b16 %v2195
        %v2232 = vunpack.c.l.b16 %v2196
        %v2233 = vunpack.c.h.b16 %v2196
        %v2234 = vunpack.c.l.b16 %v2197
        %v2235 = vunpack.c.h.b16 %v2197
        %v2236 = vunpack.c.l.b16 %v2198
        %v2237 = vunpack.c.h.b16 %v2198
        %v2238 = vunpack.c.l.b16 %v2199
        %v2239 = vunpack.c.h.b16 %v2199
        %v2240 = vunpack.c.l.b16 %v2200
        %v2241 = vunpack.c.h.b16 %v2200
        %v2242 = vunpack.c.l.b16 %v2201
        %v2243 = vunpack.c.h.b16 %v2201
        %v2244 = vunpack.c.l.b16 %v2202
        %v2245 = vunpack.c.h.b16 %v2202
        %v2246 = vunpack.c.l.b16 %v2203
        %v2247 = vunpack.c.h.b16 %v2203
        %v2248 = vunpack.c.l.b16 %v2204
        %v2249 = vunpack.c.h.b16 %v2204
        %v2250 = vunpack.c.l.b16 %v2205
        %v2251 = vunpack.c.h.b16 %v2205
        %v2252 = vunpack.c.l.b16 %v2206
        %v2253 = vunpack.c.h.b16 %v2206
        %v2254 = vunpack.c.l.b16 %v2207
        %v2255 = vunpack.c.h.b16 %v2207
        %v2256 = vpack.c.b16 %v2224, %v2224
        %v2257 = vpack.c.b16 %v2225, %v2225
        %v2258 = vpack.c.b16 %v2226, %v2226
        %v2259 = vpack.c.b16 %v2227, %v2227
        %v2260 = vpack.c.b16 %v2228, %v2228
        %v2261 = vpack.c.b16 %v2229, %v2229
        %v2262 = vpack.c.b16 %v2230, %v2230
        %v2263 = vpack.c.b16 %v2231, %v2231
        %v2264 = vpack.c.b16 %v2232, %v2232
        %v2265 = vpack.c.b16 %v2233, %v2233
        %v2266 = vpack.c.b16 %v2234, %v2234
        %v2267 = vpack.c.b16 %v2235, %v2235
        %v2268 = vpack.c.b16 %v2236, %v2236
        %v2269 = vpack.c.b16 %v2237, %v2237
        %v2270 = vpack.c.b16 %v2238, %v2238
        %v2271 = vpack.c.b16 %v2239, %v2239
        %v2272 = vpack.c.b16 %v2240, %v2240
        %v2273 = vpack.c.b16 %v2241, %v2241
        %v2274 = vpack.c.b16 %v2242, %v2242
        %v2275 = vpack.c.b16 %v2243, %v2243
        %v2276 = vpack.c.b16 %v2244, %v2244
        %v2277 = vpack.c.b16 %v2245, %v2245
        %v2278 = vpack.c.b16 %v2246, %v2246
        %v2279 = vpack.c.b16 %v2247, %v2247
        %v2280 = vpack.c.b16 %v2248, %v2248
        %v2281 = vpack.c.b16 %v2249, %v2249
        %v2282 = vpack.c.b16 %v2250, %v2250
        %v2283 = vpack.c.b16 %v2251, %v2251
        %v2284 = vpack.c.b16 %v2252, %v2252
        %v2285 = vpack.c.b16 %v2253, %v2253
        %v2286 = vpack.c.b16 %v2254, %v2254
        %v2287 = vpack.c.b16 %v2255, %v2255
        %2320 = vst [vmem:[%s271] sm:$0xf] %v2256
        %2321 = vst [vmem:[%s271 + $0x4] sm:$0xf] %v2257
        %2322 = vst [vmem:[%s271 + $0x8] sm:$0xf] %v2258
        %2323 = vst [vmem:[%s271 + $0xc] sm:$0xf] %v2259
        %2324 = vst [vmem:[%s271 + $0x10] sm:$0xf] %v2260
        %2325 = vst [vmem:[%s271 + $0x14] sm:$0xf] %v2261
        %2326 = vst [vmem:[%s271 + $0x18] sm:$0xf] %v2262
        %2327 = vst [vmem:[%s271 + $0x1c] sm:$0xf] %v2263
        %2328 = vst [vmem:[%s271 + $0x20] sm:$0xf] %v2264
        %2329 = vst [vmem:[%s271 + $0x24] sm:$0xf] %v2265
        %2330 = vst [vmem:[%s271 + $0x28] sm:$0xf] %v2266
        %2331 = vst [vmem:[%s271 + $0x2c] sm:$0xf] %v2267
        %2332 = vst [vmem:[%s271 + $0x30] sm:$0xf] %v2268
        %2333 = vst [vmem:[%s271 + $0x34] sm:$0xf] %v2269
        %2334 = vst [vmem:[%s271 + $0x38] sm:$0xf] %v2270
        %2335 = vst [vmem:[%s271 + $0x3c] sm:$0xf] %v2271
        %2336 = vst [vmem:[%s271 + $0x40] sm:$0xf] %v2272
        %2337 = vst [vmem:[%s271 + $0x44] sm:$0xf] %v2273
        %2338 = vst [vmem:[%s271 + $0x48] sm:$0xf] %v2274
        %2339 = vst [vmem:[%s271 + $0x4c] sm:$0xf] %v2275
        %2340 = vst [vmem:[%s271 + $0x50] sm:$0xf] %v2276
        %2341 = vst [vmem:[%s271 + $0x54] sm:$0xf] %v2277
        %2342 = vst [vmem:[%s271 + $0x58] sm:$0xf] %v2278
        %2343 = vst [vmem:[%s271 + $0x5c] sm:$0xf] %v2279
        %2344 = vst [vmem:[%s271 + $0x60] sm:$0xf] %v2280
        %2345 = vst [vmem:[%s271 + $0x64] sm:$0xf] %v2281
        %2346 = vst [vmem:[%s271 + $0x68] sm:$0xf] %v2282
        %2347 = vst [vmem:[%s271 + $0x6c] sm:$0xf] %v2283
        %2348 = vst [vmem:[%s271 + $0x70] sm:$0xf] %v2284
        %2349 = vst [vmem:[%s271 + $0x74] sm:$0xf] %v2285
        %2350 = vst [vmem:[%s271 + $0x78] sm:$0xf] %v2286
        %2351 = vst [vmem:[%s271 + $0x7c] sm:$0xf] %v2287
        %s2352 = sand.u32 %s181, 1
        %s2353 = scalar_lea.sflag [#allocation4], %s2352
        %s2354 = sand.u32 %s181, 1
        %s2355 = smul.addr %s2354, 128
        %s2356 = scalar_lea.vmem [#allocation3], %s2355
        // Predicated region
        $region49: #{tpu_custom_call.1} parent=47 // pred_check
          %p2357 = pneg %p191
        $region50: #{tpu_custom_call.1} parent=47 // pred_check_branch
          %2359 = sbr.rel (%p2357) target = $region52
        $region51: #{tpu_custom_call.1} parent=47 // pred_region
          %s2361 = ssub.s32 2048, 2048
          %2362 = vsyncadd %s2353, %s2361
          %s2363 = smul.addr %s21, 32
          %s2364 = smul.addr %s2363, 64
          %s2365 = scalar_lea.hbm %s7, %s2364
          %s2366 = sshll.u32 %s2356, 4
          %s2367 = int_to_ptr.vmem [resolvable:$true] %s2366
          %2372 = dma.vmem_to_hbm [thread:$0]  %s2367, 2048, %s2365, %s2353, 64, 64, 4
        $region52: #{tpu_custom_call.1} parent=47 // pred_fallthru
          _
      $region48: #{tpu_custom_call.1} parent=5 // pred_fallthru
        _
      %p2373 = scmp.le.s32.totalorder 2, %s16
      // Predicated region
      $region53: #{tpu_custom_call.1} parent=5 // pred_check
        %p2374 = pneg %p2373
      $region54: #{tpu_custom_call.1} parent=5 // pred_check_branch
        %2376 = sbr.rel (%p2374) target = $region56
      $region55: #{tpu_custom_call.1} parent=5 // pred_region
        %s2377 = ssub.s32 %s16, 2
        // Predicated region
        $region57: #{tpu_custom_call.1} parent=55 // pred_check
          %p2378 = pneg %p197
        $region58: #{tpu_custom_call.1} parent=55 // pred_check_branch
          %2380 = sbr.rel (%p2378) target = $region60
        $region59: #{tpu_custom_call.1} parent=55 // pred_region
          %s2381 = sand.u32 %s182, 1
          %s2382 = scalar_lea.sflag [#allocation4], %s2381
          %s2383 = sand.u32 %s182, 1
          %s2384 = smul.addr %s2383, 128
          %s2385 = scalar_lea.vmem [#allocation3], %s2384
          %2386 = dma.done %s2382, 2048
        $region60: #{tpu_custom_call.1} parent=55 // pred_fallthru
          _
      $region56: #{tpu_custom_call.1} parent=5 // pred_fallthru
        _
    $region6: #{tpu_custom_call.1} parent=1 // loop_footer
      %s20 = sadd.s32 1, %s16
    $region7: #{tpu_custom_call.1} parent=1 // loop_footer_branch
      %15 = sbr.rel target = $region3
    $region8: #{tpu_custom_call.1} parent=1 // loop_exit
      _
    %2387 = vsyncpa [#allocation4], 1
    %s2388 = scalar_lea.sflag [#allocation4], 1
    %2389 = vsyncpa %s2388, 1

</llo_original>
